<compile_context>
chip_gen: v7x
topology: tpu7x:2x2x1
jax: 0.10.0
libtpu: 0.0.40
codegen_flags: <defaults>
</compile_context>

<pallas_src>
import jax
import jax.numpy as jnp
from jax.experimental import pallas as pl
from jax.experimental.pallas import tpu as pltpu

EPS = 1e-5
NEG_SLOPE = 0.2
_VMEM_LIMIT = 32 * 1024 * 1024      # explicit scoped-VMEM limit (v7x-safe)
_TILE_BUDGET = 20 * 1024 * 1024     # target working set used for tile sizing


def _round_up(x, m):
    return (x + m - 1) // m * m


def _pick_tile_rows(Ho, Wo, Cin, Cpad, budget_bytes):
    """Largest divisor of Ho whose per-step working set fits the VMEM budget."""
    fixed = 2 * (16 * Cin * Cpad * 4) + 4 * (2 * Cpad * 4)          # weights + stats
    per_row = 2 * (4 * (Wo + 1) * Cin * 4) + 3 * (Wo * Cpad * 4)    # x band + y/acc
    cap = max(1, (budget_bytes - fixed) // per_row)
    tho = 1
    for d in range(1, Ho + 1):
        if Ho % d == 0 and d <= cap:
            tho = d
    return tho


def down_conv_block(x_nchw, weight, bias=None, compute_dtype=jnp.float32,
                    tile_budget=_TILE_BUDGET):
    """Forward pass of DownConvBlock.

    x_nchw: (N, Cin, H, W) float32, H and W even
    weight: (Cout, Cin, 4, 4) float32 (PyTorch Conv2d layout)
    bias:   (Cout,) or None -- ignored: InstanceNorm2d(affine=False) subtracts the
            per-channel mean, so a per-channel conv bias cancels exactly.
    returns (N, Cout, H//2, W//2) float32
    """
    del bias  # mathematically a no-op under affine=False InstanceNorm
    N, Cin, H, W = x_nchw.shape
    Cout, _, kh, kw = weight.shape
    assert (kh, kw) == (4, 4)
    assert H % 2 == 0 and W % 2 == 0, "fused k=4,s=2,p=1 kernel assumes even H, W"

    Ho, Wo = H // 2, W // 2
    Cpad = _round_up(Cout, 128)                  # lane-dense output / MXU N dim
    K2 = 2 * Cin                                 # column parity folded into channels
    THo = _pick_tile_rows(Ho, Wo, Cin, Cpad, tile_budget)
    T = Ho // THo
    TP = THo * Wo                                # output pixels per tile
    inv_npix = 1.0 / float(Ho * Wo)

    # ---- layout-only work in the wrapper (~1x input size, no im2col blowup) ----
    x_nhwc = jnp.transpose(x_nchw, (0, 2, 3, 1))                   # (N,H,W,C)
    xp = jnp.pad(x_nhwc, ((0, 0), (1, 1), (1, 1), (0, 0)))         # (N,H+2,W+2,C)
    # fold column parity into channels: xp2[n, r, p, b*Cin + c] = xp[n, r, 2p+b, c]
    xp = xp.reshape(N, H + 2, Wo + 1, K2)
    # split row parity: xq[n, a, i, p, q] = xp2[n, 2i+a, p, q]
    xq = xp.reshape(N, Ho + 1, 2, Wo + 1, K2)
    xq = jnp.transpose(xq, (0, 2, 1, 3, 4))                        # (N,2,Ho+1,Wo+1,2Cin)

    # weight (Cout,Cin,4,4) -> w_packed[ki, d, b*Cin + c, o] = w[o, c, ki, 2d+b]
    wt = jnp.transpose(weight, (2, 3, 1, 0)).astype(jnp.float32)   # (4,4,Cin,Cout)
    wt = wt.reshape(4, 2, 2, Cin, Cout).reshape(4, 2, K2, Cout)
    w_packed = jnp.pad(wt, ((0, 0), (0, 0), (0, 0), (0, Cpad - Cout)))

    def conv_taps(x_ref, w_ref, tho):
        """8 MXU matmuls over contiguous slices of the parity-packed band."""
        tp = tho * Wo
        acc = jnp.zeros((tp, Cpad), jnp.float32)
        for ki in range(4):                       # kernel row: a = ki%2, c_off = ki//2
            a, c_off = ki % 2, ki // 2
            for d in range(2):                    # kernel col pair offset
                x_tap = x_ref[a, c_off:c_off + tho, d:d + Wo, :]   # (tho, Wo, 2Cin)
                lhs = x_tap.reshape(tp, K2).astype(compute_dtype)
                rhs = w_ref[ki, d].astype(compute_dtype)           # (2Cin, Cpad)
                acc = acc + jnp.dot(lhs, rhs,
                                    preferred_element_type=jnp.float32)
        return acc

    if T == 1:
        # ---- fully fused single pass: conv + stats + normalize + LeakyReLU -----
        def fused_kernel(x_ref, w_ref, o_ref):
            acc = conv_taps(x_ref, w_ref, Ho)                      # (Ho*Wo, Cpad)
            mean = jnp.sum(acc, axis=0, keepdims=True) * inv_npix
            ex2 = jnp.sum(acc * acc, axis=0, keepdims=True) * inv_npix
            var = jnp.maximum(ex2 - mean * mean, 0.0)
            inv = jax.lax.rsqrt(var + EPS)
            yn = (acc - mean) * inv
            o_ref[...] = jnp.where(yn >= 0, yn, NEG_SLOPE * yn).astype(o_ref.dtype)

        out = pl.pallas_call(
            fused_kernel,
            out_shape=jax.ShapeDtypeStruct((N, Ho * Wo, Cpad), jnp.float32),
            grid_spec=pltpu.PrefetchScalarGridSpec(
                num_scalar_prefetch=0,
                grid=(N,),
                in_specs=[
                    pl.BlockSpec((None, 2, Ho + 1, Wo + 1, K2),
                                 lambda n: (n, 0, 0, 0, 0)),
                    pl.BlockSpec((4, 2, K2, Cpad), lambda n: (0, 0, 0, 0)),
                ],
                out_specs=pl.BlockSpec((None, Ho * Wo, Cpad),
                                       lambda n: (n, 0, 0)),
            ),
            compiler_params=pltpu.CompilerParams(
                dimension_semantics=("parallel",),
                vmem_limit_bytes=_VMEM_LIMIT),
        )(xq, w_packed)
    else:
        # band rows into overlapping h-tiles (halo of one sub-image row per tile)
        xb = jnp.stack(
            [xq[:, :, t * THo: t * THo + THo + 1] for t in range(T)], axis=1)
        # xb: (N, T, 2, THo+1, Wo+1, 2Cin)

        # -------- pass 1: fused conv taps + streamed per-channel statistics ------
        def conv_stats_kernel(x_ref, w_ref, y_ref, stats_ref):
            acc = conv_taps(x_ref, w_ref, THo)                     # (TP, Cpad)
            y_ref[...] = acc

            @pl.when(pl.program_id(1) == 0)
            def _():
                stats_ref[...] = jnp.zeros_like(stats_ref)

            stats_ref[0:1, :] += jnp.sum(acc, axis=0, keepdims=True)
            stats_ref[1:2, :] += jnp.sum(acc * acc, axis=0, keepdims=True)

        y_raw, stats = pl.pallas_call(
            conv_stats_kernel,
            out_shape=(
                jax.ShapeDtypeStruct((N, T, TP, Cpad), jnp.float32),
                jax.ShapeDtypeStruct((N, 2, Cpad), jnp.float32),
            ),
            grid_spec=pltpu.PrefetchScalarGridSpec(
                num_scalar_prefetch=0,
                grid=(N, T),
                in_specs=[
                    pl.BlockSpec((None, None, 2, THo + 1, Wo + 1, K2),
                                 lambda n, t: (n, t, 0, 0, 0, 0)),
                    pl.BlockSpec((4, 2, K2, Cpad), lambda n, t: (0, 0, 0, 0)),
                ],
                out_specs=[
                    pl.BlockSpec((None, None, TP, Cpad), lambda n, t: (n, t, 0, 0)),
                    pl.BlockSpec((None, 2, Cpad), lambda n, t: (n, 0, 0)),
                ],
            ),
            compiler_params=pltpu.CompilerParams(
                dimension_semantics=("parallel", "arbitrary"),
                vmem_limit_bytes=_VMEM_LIMIT),
        )(xb, w_packed)

        # ---- pass 2: instance-norm (single-pass stats) + LeakyReLU, in place ----
        def norm_lrelu_kernel(y_ref, stats_ref, o_ref):
            mean = stats_ref[0:1, :] * inv_npix                    # (1, Cpad)
            ex2 = stats_ref[1:2, :] * inv_npix
            var = jnp.maximum(ex2 - mean * mean, 0.0)
            inv = jax.lax.rsqrt(var + EPS)
            yn = (y_ref[...] - mean) * inv
            o_ref[...] = jnp.where(yn >= 0, yn, NEG_SLOPE * yn).astype(o_ref.dtype)

        out = pl.pallas_call(
            norm_lrelu_kernel,
            out_shape=jax.ShapeDtypeStruct((N, T, TP, Cpad), jnp.float32),
            grid_spec=pltpu.PrefetchScalarGridSpec(
                num_scalar_prefetch=0,
                grid=(N, T),
                in_specs=[
                    pl.BlockSpec((None, None, TP, Cpad), lambda n, t: (n, t, 0, 0)),
                    pl.BlockSpec((None, 2, Cpad), lambda n, t: (n, 0, 0)),
                ],
                out_specs=pl.BlockSpec((None, None, TP, Cpad),
                                       lambda n, t: (n, t, 0, 0)),
            ),
            input_output_aliases={0: 0},        # write over the raw conv buffer
            compiler_params=pltpu.CompilerParams(
                dimension_semantics=("parallel", "parallel"),
                vmem_limit_bytes=_VMEM_LIMIT),
        )(y_raw, stats)
        out = out.reshape(N, Ho * Wo, Cpad)

    out = out.reshape(N, Ho, Wo, Cpad)[..., :Cout]
    return jnp.transpose(out, (0, 3, 1, 2))                        # back to NCHW


if __name__ == "__main__":
    key = jax.random.PRNGKey(0)
    kx, kw, kb = jax.random.split(key, 3)

    N, Cin, H, W = 2, 4, 16, 16
    Cout, ksz = 8, 4

    x = jax.random.normal(kx, (N, Cin, H, W), dtype=jnp.float32)
    fan_in = Cin * ksz * ksz
    bound = 1.0 / (fan_in ** 0.5)
    weight = jax.random.uniform(kw, (Cout, Cin, ksz, ksz),
                                minval=-bound, maxval=bound, dtype=jnp.float32)
    bias = jax.random.uniform(kb, (Cout,), minval=-bound, maxval=bound,
                              dtype=jnp.float32)

    # plain-XLA reference of the same module
    conv = jax.lax.conv_general_dilated(
        x, weight, window_strides=(2, 2), padding=((1, 1), (1, 1)),
        dimension_numbers=("NCHW", "OIHW", "NCHW"))
    conv = conv + bias[None, :, None, None]
    mean = conv.mean(axis=(2, 3), keepdims=True)
    var = conv.var(axis=(2, 3), keepdims=True)          # biased, like PyTorch
    ref = (conv - mean) * jax.lax.rsqrt(var + EPS)
    ref = jnp.where(ref >= 0, ref, NEG_SLOPE * ref)

    # path 1: fully-fused single pass (whole instance fits one tile)
    y = jax.jit(down_conv_block)(x, weight, bias)
    jax.block_until_ready(y)
    assert y.shape == (N, Cout, H // 2, W // 2)
    err = float(jnp.max(jnp.abs(y - ref)))
    assert err < 1e-3, f"fused path max abs error {err}"

    # path 2: tiled two-pass (force T > 1 with a tiny tile budget)
    small_budget = 128 * 1024
    assert _pick_tile_rows(H // 2, W // 2, Cin, 128, small_budget) < H // 2
    y2 = jax.jit(lambda a, b, c: down_conv_block(a, b, c,
                                                 tile_budget=small_budget))(
        x, weight, bias)
    jax.block_until_ready(y2)
    err2 = float(jnp.max(jnp.abs(y2 - ref)))
    assert err2 < 1e-3, f"tiled path max abs error {err2}"

    print("KERNEL_OK")
</pallas_src>

<mosaic_0001>
module attributes {stable_mosaic.version = 11 : i64} {
  func.func @fused_kernel(%arg0: i32, %arg1: memref<1x2x9x9x8xf32, #tpu.memory_space<vmem>>, %arg2: memref<4x2x8x128xf32, #tpu.memory_space<vmem>>, %arg3: memref<1x64x128xf32, #tpu.memory_space<vmem>>) attributes {dimension_semantics = [#tpu.dimension_semantics<parallel>], iteration_bounds = array<i64: 2>, scalar_prefetch = 0 : i64, scratch_operands = 0 : i64, tpu.core_type = #tpu.core_type<tc>, window_params = [{transform_indices = @transform_0, window_bounds = array<i64: 1, 2, 9, 9, 8>}, {pipeline_mode = #tpu.pipeline_mode<synchronous>, transform_indices = @transform_1, window_bounds = array<i64: 4, 2, 8, 128>}, {transform_indices = @transform_2, window_bounds = array<i64: 1, 64, 128>}]} {
    %cst = arith.constant 0.000000e+00 : f32
    %0 = vector.broadcast %cst : f32 to vector<64x128xf32>
    %c0 = arith.constant 0 : index
    %c0_0 = arith.constant 0 : index
    %c0_1 = arith.constant 0 : index
    %c0_2 = arith.constant 0 : index
    %c0_3 = arith.constant 0 : index
    %1 = vector.load %arg1[%c0, %c0_0, %c0_1, %c0_2, %c0_3] : memref<1x2x9x9x8xf32, #tpu.memory_space<vmem>>, vector<1x1x8x8x8xf32>
    %2 = vector.shape_cast %1 : vector<1x1x8x8x8xf32> to vector<8x8x8xf32>
    %3 = vector.shape_cast %2 : vector<8x8x8xf32> to vector<64x8xf32>
    %c0_4 = arith.constant 0 : index
    %c0_5 = arith.constant 0 : index
    %c0_6 = arith.constant 0 : index
    %c0_7 = arith.constant 0 : index
    %4 = vector.load %arg2[%c0_4, %c0_5, %c0_6, %c0_7] : memref<4x2x8x128xf32, #tpu.memory_space<vmem>>, vector<1x1x8x128xf32>
    %5 = vector.shape_cast %4 : vector<1x1x8x128xf32> to vector<8x128xf32>
    %cst_8 = arith.constant dense<0.000000e+00> : vector<64x128xf32>
    %6 = tpu.matmul %3, %5, %cst_8 {dimension_numbers = #tpu.dot_dimension_numbers<[1], [0], [0], [1], [0, 0, 1, 1], [], []>} : vector<64x8xf32>, vector<8x128xf32>, vector<64x128xf32> -> vector<64x128xf32>
    %7 = arith.addf %0, %6 : vector<64x128xf32>
    %c0_9 = arith.constant 0 : index
    %c0_10 = arith.constant 0 : index
    %c0_11 = arith.constant 0 : index
    %c1 = arith.constant 1 : index
    %c0_12 = arith.constant 0 : index
    %8 = vector.load %arg1[%c0_9, %c0_10, %c0_11, %c1, %c0_12] : memref<1x2x9x9x8xf32, #tpu.memory_space<vmem>>, vector<1x1x8x8x8xf32>
    %9 = vector.shape_cast %8 : vector<1x1x8x8x8xf32> to vector<8x8x8xf32>
    %10 = vector.shape_cast %9 : vector<8x8x8xf32> to vector<64x8xf32>
    %c0_13 = arith.constant 0 : index
    %c1_14 = arith.constant 1 : index
    %c0_15 = arith.constant 0 : index
    %c0_16 = arith.constant 0 : index
    %11 = vector.load %arg2[%c0_13, %c1_14, %c0_15, %c0_16] : memref<4x2x8x128xf32, #tpu.memory_space<vmem>>, vector<1x1x8x128xf32>
    %12 = vector.shape_cast %11 : vector<1x1x8x128xf32> to vector<8x128xf32>
    %cst_17 = arith.constant dense<0.000000e+00> : vector<64x128xf32>
    %13 = tpu.matmul %10, %12, %cst_17 {dimension_numbers = #tpu.dot_dimension_numbers<[1], [0], [0], [1], [0, 0, 1, 1], [], []>} : vector<64x8xf32>, vector<8x128xf32>, vector<64x128xf32> -> vector<64x128xf32>
    %14 = arith.addf %7, %13 : vector<64x128xf32>
    %c0_18 = arith.constant 0 : index
    %c1_19 = arith.constant 1 : index
    %c0_20 = arith.constant 0 : index
    %c0_21 = arith.constant 0 : index
    %c0_22 = arith.constant 0 : index
    %15 = vector.load %arg1[%c0_18, %c1_19, %c0_20, %c0_21, %c0_22] : memref<1x2x9x9x8xf32, #tpu.memory_space<vmem>>, vector<1x1x8x8x8xf32>
    %16 = vector.shape_cast %15 : vector<1x1x8x8x8xf32> to vector<8x8x8xf32>
    %17 = vector.shape_cast %16 : vector<8x8x8xf32> to vector<64x8xf32>
    %c1_23 = arith.constant 1 : index
    %c0_24 = arith.constant 0 : index
    %c0_25 = arith.constant 0 : index
    %c0_26 = arith.constant 0 : index
    %18 = vector.load %arg2[%c1_23, %c0_24, %c0_25, %c0_26] : memref<4x2x8x128xf32, #tpu.memory_space<vmem>>, vector<1x1x8x128xf32>
    %19 = vector.shape_cast %18 : vector<1x1x8x128xf32> to vector<8x128xf32>
    %cst_27 = arith.constant dense<0.000000e+00> : vector<64x128xf32>
    %20 = tpu.matmul %17, %19, %cst_27 {dimension_numbers = #tpu.dot_dimension_numbers<[1], [0], [0], [1], [0, 0, 1, 1], [], []>} : vector<64x8xf32>, vector<8x128xf32>, vector<64x128xf32> -> vector<64x128xf32>
    %21 = arith.addf %14, %20 : vector<64x128xf32>
    %c0_28 = arith.constant 0 : index
    %c1_29 = arith.constant 1 : index
    %c0_30 = arith.constant 0 : index
    %c1_31 = arith.constant 1 : index
    %c0_32 = arith.constant 0 : index
    %22 = vector.load %arg1[%c0_28, %c1_29, %c0_30, %c1_31, %c0_32] : memref<1x2x9x9x8xf32, #tpu.memory_space<vmem>>, vector<1x1x8x8x8xf32>
    %23 = vector.shape_cast %22 : vector<1x1x8x8x8xf32> to vector<8x8x8xf32>
    %24 = vector.shape_cast %23 : vector<8x8x8xf32> to vector<64x8xf32>
    %c1_33 = arith.constant 1 : index
    %c1_34 = arith.constant 1 : index
    %c0_35 = arith.constant 0 : index
    %c0_36 = arith.constant 0 : index
    %25 = vector.load %arg2[%c1_33, %c1_34, %c0_35, %c0_36] : memref<4x2x8x128xf32, #tpu.memory_space<vmem>>, vector<1x1x8x128xf32>
    %26 = vector.shape_cast %25 : vector<1x1x8x128xf32> to vector<8x128xf32>
    %cst_37 = arith.constant dense<0.000000e+00> : vector<64x128xf32>
    %27 = tpu.matmul %24, %26, %cst_37 {dimension_numbers = #tpu.dot_dimension_numbers<[1], [0], [0], [1], [0, 0, 1, 1], [], []>} : vector<64x8xf32>, vector<8x128xf32>, vector<64x128xf32> -> vector<64x128xf32>
    %28 = arith.addf %21, %27 : vector<64x128xf32>
    %c0_38 = arith.constant 0 : index
    %c0_39 = arith.constant 0 : index
    %c1_40 = arith.constant 1 : index
    %c0_41 = arith.constant 0 : index
    %c0_42 = arith.constant 0 : index
    %29 = vector.load %arg1[%c0_38, %c0_39, %c1_40, %c0_41, %c0_42] : memref<1x2x9x9x8xf32, #tpu.memory_space<vmem>>, vector<1x1x8x8x8xf32>
    %30 = vector.shape_cast %29 : vector<1x1x8x8x8xf32> to vector<8x8x8xf32>
    %31 = vector.shape_cast %30 : vector<8x8x8xf32> to vector<64x8xf32>
    %c2 = arith.constant 2 : index
    %c0_43 = arith.constant 0 : index
    %c0_44 = arith.constant 0 : index
    %c0_45 = arith.constant 0 : index
    %32 = vector.load %arg2[%c2, %c0_43, %c0_44, %c0_45] : memref<4x2x8x128xf32, #tpu.memory_space<vmem>>, vector<1x1x8x128xf32>
    %33 = vector.shape_cast %32 : vector<1x1x8x128xf32> to vector<8x128xf32>
    %cst_46 = arith.constant dense<0.000000e+00> : vector<64x128xf32>
    %34 = tpu.matmul %31, %33, %cst_46 {dimension_numbers = #tpu.dot_dimension_numbers<[1], [0], [0], [1], [0, 0, 1, 1], [], []>} : vector<64x8xf32>, vector<8x128xf32>, vector<64x128xf32> -> vector<64x128xf32>
    %35 = arith.addf %28, %34 : vector<64x128xf32>
    %c0_47 = arith.constant 0 : index
    %c0_48 = arith.constant 0 : index
    %c1_49 = arith.constant 1 : index
    %c1_50 = arith.constant 1 : index
    %c0_51 = arith.constant 0 : index
    %36 = vector.load %arg1[%c0_47, %c0_48, %c1_49, %c1_50, %c0_51] : memref<1x2x9x9x8xf32, #tpu.memory_space<vmem>>, vector<1x1x8x8x8xf32>
    %37 = vector.shape_cast %36 : vector<1x1x8x8x8xf32> to vector<8x8x8xf32>
    %38 = vector.shape_cast %37 : vector<8x8x8xf32> to vector<64x8xf32>
    %c2_52 = arith.constant 2 : index
    %c1_53 = arith.constant 1 : index
    %c0_54 = arith.constant 0 : index
    %c0_55 = arith.constant 0 : index
    %39 = vector.load %arg2[%c2_52, %c1_53, %c0_54, %c0_55] : memref<4x2x8x128xf32, #tpu.memory_space<vmem>>, vector<1x1x8x128xf32>
    %40 = vector.shape_cast %39 : vector<1x1x8x128xf32> to vector<8x128xf32>
    %cst_56 = arith.constant dense<0.000000e+00> : vector<64x128xf32>
    %41 = tpu.matmul %38, %40, %cst_56 {dimension_numbers = #tpu.dot_dimension_numbers<[1], [0], [0], [1], [0, 0, 1, 1], [], []>} : vector<64x8xf32>, vector<8x128xf32>, vector<64x128xf32> -> vector<64x128xf32>
    %42 = arith.addf %35, %41 : vector<64x128xf32>
    %c0_57 = arith.constant 0 : index
    %c1_58 = arith.constant 1 : index
    %c1_59 = arith.constant 1 : index
    %c0_60 = arith.constant 0 : index
    %c0_61 = arith.constant 0 : index
    %43 = vector.load %arg1[%c0_57, %c1_58, %c1_59, %c0_60, %c0_61] : memref<1x2x9x9x8xf32, #tpu.memory_space<vmem>>, vector<1x1x8x8x8xf32>
    %44 = vector.shape_cast %43 : vector<1x1x8x8x8xf32> to vector<8x8x8xf32>
    %45 = vector.shape_cast %44 : vector<8x8x8xf32> to vector<64x8xf32>
    %c3 = arith.constant 3 : index
    %c0_62 = arith.constant 0 : index
    %c0_63 = arith.constant 0 : index
    %c0_64 = arith.constant 0 : index
    %46 = vector.load %arg2[%c3, %c0_62, %c0_63, %c0_64] : memref<4x2x8x128xf32, #tpu.memory_space<vmem>>, vector<1x1x8x128xf32>
    %47 = vector.shape_cast %46 : vector<1x1x8x128xf32> to vector<8x128xf32>
    %cst_65 = arith.constant dense<0.000000e+00> : vector<64x128xf32>
    %48 = tpu.matmul %45, %47, %cst_65 {dimension_numbers = #tpu.dot_dimension_numbers<[1], [0], [0], [1], [0, 0, 1, 1], [], []>} : vector<64x8xf32>, vector<8x128xf32>, vector<64x128xf32> -> vector<64x128xf32>
    %49 = arith.addf %42, %48 : vector<64x128xf32>
    %c0_66 = arith.constant 0 : index
    %c1_67 = arith.constant 1 : index
    %c1_68 = arith.constant 1 : index
    %c1_69 = arith.constant 1 : index
    %c0_70 = arith.constant 0 : index
    %50 = vector.load %arg1[%c0_66, %c1_67, %c1_68, %c1_69, %c0_70] : memref<1x2x9x9x8xf32, #tpu.memory_space<vmem>>, vector<1x1x8x8x8xf32>
    %51 = vector.shape_cast %50 : vector<1x1x8x8x8xf32> to vector<8x8x8xf32>
    %52 = vector.shape_cast %51 : vector<8x8x8xf32> to vector<64x8xf32>
    %c3_71 = arith.constant 3 : index
    %c1_72 = arith.constant 1 : index
    %c0_73 = arith.constant 0 : index
    %c0_74 = arith.constant 0 : index
    %53 = vector.load %arg2[%c3_71, %c1_72, %c0_73, %c0_74] : memref<4x2x8x128xf32, #tpu.memory_space<vmem>>, vector<1x1x8x128xf32>
    %54 = vector.shape_cast %53 : vector<1x1x8x128xf32> to vector<8x128xf32>
    %cst_75 = arith.constant dense<0.000000e+00> : vector<64x128xf32>
    %55 = tpu.matmul %52, %54, %cst_75 {dimension_numbers = #tpu.dot_dimension_numbers<[1], [0], [0], [1], [0, 0, 1, 1], [], []>} : vector<64x8xf32>, vector<8x128xf32>, vector<64x128xf32> -> vector<64x128xf32>
    %56 = arith.addf %49, %55 : vector<64x128xf32>
    %cst_76 = arith.constant dense<0.000000e+00> : vector<128xf32>
    %57 = vector.multi_reduction <add>, %56, %cst_76 [0] : vector<64x128xf32> to vector<128xf32>
    %58 = vector.shape_cast %57 : vector<128xf32> to vector<1x128xf32>
    %cst_77 = arith.constant 1.562500e-02 : f32
    %59 = vector.broadcast %cst_77 : f32 to vector<1x128xf32>
    %60 = arith.mulf %58, %59 : vector<1x128xf32>
    %61 = arith.mulf %56, %56 : vector<64x128xf32>
    %cst_78 = arith.constant dense<0.000000e+00> : vector<128xf32>
    %62 = vector.multi_reduction <add>, %61, %cst_78 [0] : vector<64x128xf32> to vector<128xf32>
    %63 = vector.shape_cast %62 : vector<128xf32> to vector<1x128xf32>
    %cst_79 = arith.constant 1.562500e-02 : f32
    %64 = vector.broadcast %cst_79 : f32 to vector<1x128xf32>
    %65 = arith.mulf %63, %64 : vector<1x128xf32>
    %66 = arith.mulf %60, %60 : vector<1x128xf32>
    %67 = arith.subf %65, %66 : vector<1x128xf32>
    %cst_80 = arith.constant 0.000000e+00 : f32
    %68 = vector.broadcast %cst_80 : f32 to vector<1x128xf32>
    %69 = arith.maximumf %67, %68 : vector<1x128xf32>
    %cst_81 = arith.constant 9.99999974E-6 : f32
    %70 = vector.broadcast %cst_81 : f32 to vector<1x128xf32>
    %71 = arith.addf %69, %70 : vector<1x128xf32>
    %72 = math.rsqrt %71 : vector<1x128xf32>
    %73 = vector.broadcast %60 : vector<1x128xf32> to vector<64x128xf32>
    %74 = arith.subf %56, %73 : vector<64x128xf32>
    %75 = vector.broadcast %72 : vector<1x128xf32> to vector<64x128xf32>
    %76 = arith.mulf %74, %75 : vector<64x128xf32>
    %cst_82 = arith.constant 0.000000e+00 : f32
    %77 = vector.broadcast %cst_82 : f32 to vector<64x128xf32>
    %78 = arith.cmpf oge, %76, %77 : vector<64x128xf32>
    %cst_83 = arith.constant 2.000000e-01 : f32
    %79 = vector.broadcast %cst_83 : f32 to vector<64x128xf32>
    %80 = arith.mulf %79, %76 : vector<64x128xf32>
    %81 = arith.select %78, %76, %80 : vector<64x128xi1>, vector<64x128xf32>
    %c0_84 = arith.constant 0 : index
    %c0_85 = arith.constant 0 : index
    %c0_86 = arith.constant 0 : index
    %82 = vector.load %arg3[%c0_84, %c0_85, %c0_86] : memref<1x64x128xf32, #tpu.memory_space<vmem>>, vector<1x64x128xf32>
    %83 = vector.shape_cast %82 : vector<1x64x128xf32> to vector<64x128xf32>
    %84 = vector.shape_cast %81 : vector<64x128xf32> to vector<1x64x128xf32>
    tpu.vector_store %arg3[%c0_84, %c0_85, %c0_86], %84 {strides = array<i32>} : memref<1x64x128xf32, #tpu.memory_space<vmem>>, vector<1x64x128xf32>,
    return
  }
  func.func @transform_0(%arg0: i32) -> (i32, i32, i32, i32, i32) {
    %c0_i32 = arith.constant 0 : i32
    %c0_i32_0 = arith.constant 0 : i32
    %c0_i32_1 = arith.constant 0 : i32
    %c0_i32_2 = arith.constant 0 : i32
    %c0_i32_3 = arith.constant 0 : i32
    return %arg0, %c0_i32, %c0_i32_0, %c0_i32_1, %c0_i32_2 : i32, i32, i32, i32, i32
  }
  func.func @transform_1(%arg0: i32) -> (i32, i32, i32, i32) {
    %c0_i32 = arith.constant 0 : i32
    %c0_i32_0 = arith.constant 0 : i32
    %c0_i32_1 = arith.constant 0 : i32
    %c0_i32_2 = arith.constant 0 : i32
    %c0_i32_3 = arith.constant 0 : i32
    return %c0_i32, %c0_i32_0, %c0_i32_1, %c0_i32_2 : i32, i32, i32, i32
  }
  func.func @transform_2(%arg0: i32) -> (i32, i32, i32) {
    %c0_i32 = arith.constant 0 : i32
    %c0_i32_0 = arith.constant 0 : i32
    %c0_i32_1 = arith.constant 0 : i32
    return %arg0, %c0_i32, %c0_i32_0 : i32, i32, i32
  }
}

</mosaic_0001>

<llo_original>
// kernel: down_conv_block.1
$region0: #{down_conv_block.1}
  #allocation0 [shape = 'u32[]', space=smem, size = 0x4, offset = 0x4, fixed_abs, tag = 'smem constant byte address 0x4 - core index']
  #allocation1 [shape = 'u32[144,128]{1,0:T(1,128)}', space=vmem, size = 0x12000, scoped, tag = 'internal scratch']
  %s0 = inlined_call_operand.vmem [shape: f32[2,2,9,9,8], index: 0, kind: input, shape index: {}]
  %s1 = inlined_call_operand.vmem [shape: f32[4,2,8,128], index: 1, kind: input, shape index: {}]
  %s2 = inlined_call_operand.vmem [shape: f32[2,64,128], index: 2, kind: output, shape index: {}]
  %s3 = sld [smem:[#allocation0]]
  $region41: #{down_conv_block.1} parent=0
    _
  %s5 = ssub.s32 1, %s3
  %s6 = scalar_select 0, %s5, %s3
  loop: start=0, step=1, limit=4
  $region2: #{down_conv_block.1} parent=0 // loop_pre_header
    _
  $region3: #{down_conv_block.1} parent=0 // loop_header
    %s8 = sphi 0, %s12
    %p9 = scmp.ge.s32.totalorder %s8, 4
    %s18 = sphi 0, %s20
    %s21 = sphi 0, %s18
    %s22 = sphi 0, %s21
    %s38 = sphi 0, %s22
    %s42 = sphi 0, %s42
    %s44 = sphi 0, %s42
    %s45 = sphi 0, %s44
    %s59 = sphi 0, %s45
    %s65 = sphi 0, %s67
    %s68 = sphi 0, %s65
    %s69 = sphi 0, %s68
    %s85 = sphi 0, %s69
  $region4: #{down_conv_block.1} parent=0 // loop_header_branch
    %11 = sbr.rel (%p9) target = $region8
  $region5: #{down_conv_block.1} parent=0 // loop_body
    %s13 = ssub.s32 %s8, 1
    %s14 = ssub.s32 %s8, 2
    %s15 = sadd.s32 %s8, 1
    %s16 = ssub.s32 %s8, %s15
    %p17 = scmp.eq.s32.totalorder %s16, 0
    %s19 = sadd.s32 %s18, 1
    %s20 = scalar_select %p17, %s18, %s19
    %p23 = pneg %p17
    %p24 = scmp.eq.s32.totalorder %s8, 1
    %p25 = por %p23, %p24
    %p26 = scmp.ne.s32.totalorder %s18, %s21
    %p27 = scmp.eq.s32.totalorder %s8, 0
    %p28 = por %p26, %p27
    %p29 = scmp.ne.s32.totalorder %s18, %s21
    %p30 = scmp.eq.s32.totalorder %s13, 1
    %p31 = por %p29, %p30
    %p32 = scmp.ne.s32.totalorder %s21, %s22
    %p33 = scmp.eq.s32.totalorder %s13, 0
    %p34 = por %p32, %p33
    %p35 = scmp.ne.s32.totalorder %s21, %s22
    %p36 = scmp.eq.s32.totalorder %s14, 1
    %p37 = por %p35, %p36
    %p39 = scmp.ne.s32.totalorder %s22, %s38
    %p40 = scmp.eq.s32.totalorder %s14, 0
    %p41 = por %p39, %p40
    %s43 = sadd.s32 %s42, 1
    %p46 = scmp.eq.s32.totalorder %s8, 1
    %p47 = scmp.ne.s32.totalorder %s42, %s44
    %p48 = scmp.eq.s32.totalorder %s8, 0
    %p49 = por %p47, %p48
    %p50 = scmp.ne.s32.totalorder %s42, %s44
    %p51 = scmp.eq.s32.totalorder %s13, 1
    %p52 = por %p50, %p51
    %p53 = scmp.ne.s32.totalorder %s44, %s45
    %p54 = scmp.eq.s32.totalorder %s13, 0
    %p55 = por %p53, %p54
    %p56 = scmp.ne.s32.totalorder %s44, %s45
    %p57 = scmp.eq.s32.totalorder %s14, 1
    %p58 = por %p56, %p57
    %p60 = scmp.ne.s32.totalorder %s45, %s59
    %p61 = scmp.eq.s32.totalorder %s14, 0
    %p62 = por %p60, %p61
    %s63 = ssub.s32 %s8, %s15
    %p64 = scmp.eq.s32.totalorder %s63, 0
    %s66 = sadd.s32 %s65, 1
    %s67 = scalar_select %p64, %s65, %s66
    %p70 = pneg %p64
    %p71 = scmp.eq.s32.totalorder %s8, 1
    %p72 = por %p70, %p71
    %p73 = scmp.ne.s32.totalorder %s65, %s68
    %p74 = scmp.eq.s32.totalorder %s8, 0
    %p75 = por %p73, %p74
    %p76 = scmp.ne.s32.totalorder %s65, %s68
    %p77 = scmp.eq.s32.totalorder %s13, 1
    %p78 = por %p76, %p77
    %p79 = scmp.ne.s32.totalorder %s68, %s69
    %p80 = scmp.eq.s32.totalorder %s13, 0
    %p81 = por %p79, %p80
    %p82 = scmp.ne.s32.totalorder %s68, %s69
    %p83 = scmp.eq.s32.totalorder %s14, 1
    %p84 = por %p82, %p83
    %p86 = scmp.ne.s32.totalorder %s69, %s85
    %p87 = scmp.eq.s32.totalorder %s14, 0
    %p88 = por %p86, %p87
    %p89 = scmp.le.s32.totalorder 1, %s8
    %p90 = scmp.lt.s32.totalorder %s8, 3
    %p91 = pnand %p89, %p90
    %p92 = pneg %p91
    // Predicated region
    $region9: #{down_conv_block.1} parent=5 // pred_check
      _
    $region10: #{down_conv_block.1} parent=5 // pred_check_branch
      %94 = sbr.rel (%p91) target = $region12
    $region11: #{down_conv_block.1} parent=5 // pred_region
      %s95 = ssub.s32 %s8, 1
      // Predicated region
      $region13: #{down_conv_block.1} parent=11 // pred_check
        %p96 = pneg %p55
      $region14: #{down_conv_block.1} parent=11 // pred_check_branch
        %98 = sbr.rel (%p96) target = $region16
      $region15: #{down_conv_block.1} parent=11 // pred_region
        _
      $region16: #{down_conv_block.1} parent=11 // pred_fallthru
        _
    $region12: #{down_conv_block.1} parent=5 // pred_fallthru
      _
    %p99 = scmp.lt.s32.totalorder %s8, 2
    // Predicated region
    $region17: #{down_conv_block.1} parent=5 // pred_check
      %p100 = pneg %p99
    $region18: #{down_conv_block.1} parent=5 // pred_check_branch
      %102 = sbr.rel (%p100) target = $region20
    $region19: #{down_conv_block.1} parent=5 // pred_region
      // Predicated region
      $region21: #{down_conv_block.1} parent=19 // pred_check
        %p103 = pneg %p28
      $region22: #{down_conv_block.1} parent=19 // pred_check_branch
        %105 = sbr.rel (%p103) target = $region24
      $region23: #{down_conv_block.1} parent=19 // pred_region
        %p106 = scmp.lt.s32.totalorder %s8, 1
        %s107 = scalar_select %p106, %s8, 1
        %s108 = smul.addr %s107, 36
        %s109 = smul.addr %s108, 8
        %s110 = scalar_lea.vmem %s0, %s109
      $region24: #{down_conv_block.1} parent=19 // pred_fallthru
        _
    $region20: #{down_conv_block.1} parent=5 // pred_fallthru
      _
    %p111 = scmp.le.s32.totalorder 1, %s8
    %p112 = scmp.lt.s32.totalorder %s8, 3
    %p113 = pnand %p111, %p112
    %p114 = pneg %p113
    // Predicated region
    $region25: #{down_conv_block.1} parent=5 // pred_check
      _
    $region26: #{down_conv_block.1} parent=5 // pred_check_branch
      %116 = sbr.rel (%p113) target = $region28
    $region27: #{down_conv_block.1} parent=5 // pred_region
      %s117 = ssub.s32 %s8, 1
      %p118 = scmp.lt.s32.totalorder %s13, 1
      %s119 = scalar_select %p118, %s13, 1
      %s120 = smul.addr %s119, 36
      %s121 = smul.addr %s120, 8
      %s122 = scalar_lea.vmem %s0, %s121
      %p123 = pneg %p34
      %p124 = pneg %p31
      %p125 = pneg %p55
      %p126 = pneg %p52
      %p127 = pneg %p81
      %p128 = pneg %p78
      %p129 = scmp.lt.s32.totalorder %s13, 1
      %s130 = scalar_select %p129, %s13, 1
      %s131 = smul.addr %s130, 8
      %s132 = smul.addr %s131, 8
      %s133 = scalar_lea.vmem %s2, %s132
      %p134 = scmp.lt.s32.totalorder %s13, 1
      %s135 = scalar_select %p134, %s13, 1
      %s136 = smul.addr %s135, 36
      %s137 = smul.addr %s136, 8
      %s138 = scalar_lea.vmem %s0, %s137
      %p139 = scmp.lt.s32.totalorder %s13, 1
      %s140 = scalar_select %p139, %s13, 1
      %s141 = smul.addr %s140, 8
      %s142 = smul.addr %s141, 8
      %s143 = scalar_lea.vmem %s2, %s142
      %v144 = vld [vmem:[%s138] sm:$0xff]
      %v145 = vld [vmem:[%s138 + $0x10] sm:$0xff]
      %v146 = vld [vmem:[%s138 + $0x20] sm:$0xff]
      %v147 = vld [vmem:[%s138 + $0x30] sm:$0xff]
      %v148 = vld [vmem:[%s138 + $0x40] sm:$0xff]
      %v149 = vld [vmem:[%s138 + $0x50] sm:$0xff]
      %v150 = vld [vmem:[%s138 + $0x60] sm:$0xff]
      %v151 = vld [vmem:[%s138 + $0x70] sm:$0xff]
      %v152 = vld [vmem:[%s1] sm:$0xff]
      %v153 = vld [vmem:[%s138 + $0x1] sm:$0xff]
      %v154 = vld [vmem:[%s138 + $0x11] sm:$0xff]
      %v155 = vld [vmem:[%s138 + $0x21] sm:$0xff]
      %v156 = vld [vmem:[%s138 + $0x31] sm:$0xff]
      %v157 = vld [vmem:[%s138 + $0x41] sm:$0xff]
      %v158 = vld [vmem:[%s138 + $0x51] sm:$0xff]
      %v159 = vld [vmem:[%s138 + $0x61] sm:$0xff]
      %v160 = vld [vmem:[%s138 + $0x71] sm:$0xff]
      %s161 = scalar_lea.vmem %s1, 8
      %v162 = vld [vmem:[%s161] sm:$0xff]
      %vm163 = vcmask 64512
      %v165 = vsel %vm163, %v153, 0
      %v168 = vsel %vm163, %v154, 0
      %v171 = vsel %vm163, %v155, 0
      %v174 = vsel %vm163, %v156, 0
      %v177 = vsel %vm163, %v157, 0
      %v180 = vsel %vm163, %v158, 0
      %v183 = vsel %vm163, %v159, 0
      %v186 = vsel %vm163, %v160, 0
      %188 = vmatprep.subr.mxu0 0.0
      %189 = vmatpush1.msra.mxu0 %v162
      %190 = vmatprep.subr.mxu0 0.0
      %191 = vmatpush1.msra.mxu0 0.0
      %192 = vmatprep.subr.mxu0 0.0
      %193 = vmatpush1.msra.mxu0 0.0
      %194 = vmatprep.subr.mxu0 0.0
      %195 = vmatpush1.msra.mxu0 0.0
      %196 = vmatprep.subr.mxu0 0.0
      %197 = vmatpush1.msra.mxu0 0.0
      %198 = vmatprep.subr.mxu0 0.0
      %199 = vmatpush1.msra.mxu0 0.0
      %200 = vmatprep.subr.mxu0 0.0
      %201 = vmatpush1.msra.mxu0 0.0
      %202 = vmatprep.subr.mxu0 0.0
      %203 = vmatpush1.msra.mxu0 0.0
      %204 = vmatprep.subr.mxu0 0.0
      %205 = vmatpush1.msra.mxu0 0.0
      %206 = vmatprep.subr.mxu0 0.0
      %207 = vmatpush1.msra.mxu0 0.0
      %208 = vmatprep.subr.mxu0 0.0
      %209 = vmatpush1.msra.mxu0 0.0
      %210 = vmatprep.subr.mxu0 0.0
      %211 = vmatpush1.msra.mxu0 0.0
      %212 = vmatprep.subr.mxu0 0.0
      %213 = vmatpush1.msra.mxu0 0.0
      %214 = vmatprep.subr.mxu0 0.0
      %215 = vmatpush1.msra.mxu0 0.0
      %216 = vmatprep.subr.mxu0 0.0
      %217 = vmatpush1.msra.mxu0 0.0
      %218 = vmatprep.subr.mxu0 0.0
      %219 = vmatpush1.msra.mxu0 0.0
      %220 = vmatprep.subr.mxu0 0.0
      %221 = vmatpush1.msra.mxu0 0.0
      %222 = vmatprep.subr.mxu0 0.0
      %223 = vmatpush1.msra.mxu0 0.0
      %224 = vmatprep.subr.mxu0 0.0
      %225 = vmatpush1.msra.mxu0 0.0
      %226 = vmatprep.subr.mxu0 0.0
      %227 = vmatpush1.msra.mxu0 0.0
      %228 = vmatprep.subr.mxu0 0.0
      %229 = vmatpush1.msra.mxu0 0.0
      %230 = vmatprep.subr.mxu0 0.0
      %231 = vmatpush1.msra.mxu0 0.0
      %232 = vmatprep.subr.mxu0 0.0
      %233 = vmatpush1.msra.mxu0 0.0
      %234 = vmatprep.subr.mxu0 0.0
      %235 = vmatpush1.msra.mxu0 0.0
      %236 = vmatprep.subr.mxu0 0.0
      %237 = vmatpush1.msra.mxu0 0.0
      %238 = vmatprep.subr.mxu0 0.0
      %239 = vmatpush1.msra.mxu0 0.0
      %240 = vmatprep.subr.mxu0 0.0
      %241 = vmatpush1.msra.mxu0 0.0
      %242 = vmatprep.subr.mxu0 0.0
      %243 = vmatpush1.msra.mxu0 0.0
      %244 = vmatprep.subr.mxu0 0.0
      %245 = vmatpush1.msra.mxu0 0.0
      %246 = vmatprep.subr.mxu0 0.0
      %247 = vmatpush1.msra.mxu0 0.0
      %248 = vmatprep.subr.mxu0 0.0
      %249 = vmatpush1.msra.mxu0 0.0
      %250 = vmatprep.subr.mxu0 0.0
      %251 = vmatpush1.msra.mxu0 0.0
      %252 = vmatprep.mubr.f32.mxu0 0.0
      %253 = vmatmul.mubr.f32.gmra.mrb[0].mxu0 %v165
      %v254 = vpop.f32.mrb[0].mxu0
      %v255 = vadd.f32 0.0, %v254
      %v256 = vpop.f32.mrb[0].mxu0
      %257 = vmatprep.mubr.f32.mxu0 0.0
      %258 = vmatmul.mubr.f32.gmra.mrb[0].mxu0 %v168
      %v259 = vpop.f32.mrb[0].mxu0
      %v260 = vadd.f32 0.0, %v259
      %v261 = vpop.f32.mrb[0].mxu0
      %262 = vmatprep.mubr.f32.mxu0 0.0
      %263 = vmatmul.mubr.f32.gmra.mrb[0].mxu0 %v171
      %v264 = vpop.f32.mrb[0].mxu0
      %v265 = vadd.f32 0.0, %v264
      %v266 = vpop.f32.mrb[0].mxu0
      %267 = vmatprep.mubr.f32.mxu0 0.0
      %268 = vmatmul.mubr.f32.gmra.mrb[0].mxu0 %v174
      %v269 = vpop.f32.mrb[0].mxu0
      %v270 = vadd.f32 0.0, %v269
      %v271 = vpop.f32.mrb[0].mxu0
      %272 = vmatprep.mubr.f32.mxu0 0.0
      %273 = vmatmul.mubr.f32.gmra.mrb[0].mxu0 %v177
      %v274 = vpop.f32.mrb[0].mxu0
      %v275 = vadd.f32 0.0, %v274
      %v276 = vpop.f32.mrb[0].mxu0
      %277 = vmatprep.mubr.f32.mxu0 0.0
      %278 = vmatmul.mubr.f32.gmra.mrb[0].mxu0 %v180
      %v279 = vpop.f32.mrb[0].mxu0
      %v280 = vadd.f32 0.0, %v279
      %v281 = vpop.f32.mrb[0].mxu0
      %282 = vmatprep.mubr.f32.mxu0 0.0
      %283 = vmatmul.mubr.f32.gmra.mrb[0].mxu0 %v183
      %v284 = vpop.f32.mrb[0].mxu0
      %v285 = vadd.f32 0.0, %v284
      %v286 = vpop.f32.mrb[0].mxu0
      %287 = vmatprep.mubr.f32.mxu0 0.0
      %288 = vmatmul.mubr.f32.gmra.mrb[0].mxu0 %v186
      %v289 = vpop.f32.mrb[0].mxu0
      %v290 = vadd.f32 0.0, %v289
      %v291 = vpop.f32.mrb[0].mxu0
      %292 = vdwg.mxu0
      %v294 = vsel %vm163, %v144, 0
      %v297 = vsel %vm163, %v145, 0
      %v300 = vsel %vm163, %v146, 0
      %v303 = vsel %vm163, %v147, 0
      %v306 = vsel %vm163, %v148, 0
      %v309 = vsel %vm163, %v149, 0
      %v312 = vsel %vm163, %v150, 0
      %v315 = vsel %vm163, %v151, 0
      %317 = vmatprep.subr.mxu0 0.0
      %318 = vmatpush1.msra.mxu0 %v152
      %319 = vmatprep.subr.mxu0 0.0
      %320 = vmatpush1.msra.mxu0 0.0
      %321 = vmatprep.subr.mxu0 0.0
      %322 = vmatpush1.msra.mxu0 0.0
      %323 = vmatprep.subr.mxu0 0.0
      %324 = vmatpush1.msra.mxu0 0.0
      %325 = vmatprep.subr.mxu0 0.0
      %326 = vmatpush1.msra.mxu0 0.0
      %327 = vmatprep.subr.mxu0 0.0
      %328 = vmatpush1.msra.mxu0 0.0
      %329 = vmatprep.subr.mxu0 0.0
      %330 = vmatpush1.msra.mxu0 0.0
      %331 = vmatprep.subr.mxu0 0.0
      %332 = vmatpush1.msra.mxu0 0.0
      %333 = vmatprep.subr.mxu0 0.0
      %334 = vmatpush1.msra.mxu0 0.0
      %335 = vmatprep.subr.mxu0 0.0
      %336 = vmatpush1.msra.mxu0 0.0
      %337 = vmatprep.subr.mxu0 0.0
      %338 = vmatpush1.msra.mxu0 0.0
      %339 = vmatprep.subr.mxu0 0.0
      %340 = vmatpush1.msra.mxu0 0.0
      %341 = vmatprep.subr.mxu0 0.0
      %342 = vmatpush1.msra.mxu0 0.0
      %343 = vmatprep.subr.mxu0 0.0
      %344 = vmatpush1.msra.mxu0 0.0
      %345 = vmatprep.subr.mxu0 0.0
      %346 = vmatpush1.msra.mxu0 0.0
      %347 = vmatprep.subr.mxu0 0.0
      %348 = vmatpush1.msra.mxu0 0.0
      %349 = vmatprep.subr.mxu0 0.0
      %350 = vmatpush1.msra.mxu0 0.0
      %351 = vmatprep.subr.mxu0 0.0
      %352 = vmatpush1.msra.mxu0 0.0
      %353 = vmatprep.subr.mxu0 0.0
      %354 = vmatpush1.msra.mxu0 0.0
      %355 = vmatprep.subr.mxu0 0.0
      %356 = vmatpush1.msra.mxu0 0.0
      %357 = vmatprep.subr.mxu0 0.0
      %358 = vmatpush1.msra.mxu0 0.0
      %359 = vmatprep.subr.mxu0 0.0
      %360 = vmatpush1.msra.mxu0 0.0
      %361 = vmatprep.subr.mxu0 0.0
      %362 = vmatpush1.msra.mxu0 0.0
      %363 = vmatprep.subr.mxu0 0.0
      %364 = vmatpush1.msra.mxu0 0.0
      %365 = vmatprep.subr.mxu0 0.0
      %366 = vmatpush1.msra.mxu0 0.0
      %367 = vmatprep.subr.mxu0 0.0
      %368 = vmatpush1.msra.mxu0 0.0
      %369 = vmatprep.subr.mxu0 0.0
      %370 = vmatpush1.msra.mxu0 0.0
      %371 = vmatprep.subr.mxu0 0.0
      %372 = vmatpush1.msra.mxu0 0.0
      %373 = vmatprep.subr.mxu0 0.0
      %374 = vmatpush1.msra.mxu0 0.0
      %375 = vmatprep.subr.mxu0 0.0
      %376 = vmatpush1.msra.mxu0 0.0
      %377 = vmatprep.subr.mxu0 0.0
      %378 = vmatpush1.msra.mxu0 0.0
      %379 = vmatprep.subr.mxu0 0.0
      %380 = vmatpush1.msra.mxu0 0.0
      %381 = vmatprep.mubr.f32.mxu0 0.0
      %382 = vmatmul.mubr.f32.gmra.mrb[0].mxu0 %v294
      %v383 = vpop.f32.mrb[0].mxu0
      %v384 = vadd.f32 %v255, %v383
      %v385 = vpop.f32.mrb[0].mxu0
      %386 = vmatprep.mubr.f32.mxu0 0.0
      %387 = vmatmul.mubr.f32.gmra.mrb[0].mxu0 %v297
      %v388 = vpop.f32.mrb[0].mxu0
      %v389 = vadd.f32 %v260, %v388
      %v390 = vpop.f32.mrb[0].mxu0
      %391 = vmatprep.mubr.f32.mxu0 0.0
      %392 = vmatmul.mubr.f32.gmra.mrb[0].mxu0 %v300
      %v393 = vpop.f32.mrb[0].mxu0
      %v394 = vadd.f32 %v265, %v393
      %v395 = vpop.f32.mrb[0].mxu0
      %396 = vmatprep.mubr.f32.mxu0 0.0
      %397 = vmatmul.mubr.f32.gmra.mrb[0].mxu0 %v303
      %v398 = vpop.f32.mrb[0].mxu0
      %v399 = vadd.f32 %v270, %v398
      %v400 = vpop.f32.mrb[0].mxu0
      %401 = vmatprep.mubr.f32.mxu0 0.0
      %402 = vmatmul.mubr.f32.gmra.mrb[0].mxu0 %v306
      %v403 = vpop.f32.mrb[0].mxu0
      %v404 = vadd.f32 %v275, %v403
      %v405 = vpop.f32.mrb[0].mxu0
      %406 = vmatprep.mubr.f32.mxu0 0.0
      %407 = vmatmul.mubr.f32.gmra.mrb[0].mxu0 %v309
      %v408 = vpop.f32.mrb[0].mxu0
      %v409 = vadd.f32 %v280, %v408
      %v410 = vpop.f32.mrb[0].mxu0
      %411 = vmatprep.mubr.f32.mxu0 0.0
      %412 = vmatmul.mubr.f32.gmra.mrb[0].mxu0 %v312
      %v413 = vpop.f32.mrb[0].mxu0
      %v414 = vadd.f32 %v285, %v413
      %v415 = vpop.f32.mrb[0].mxu0
      %416 = vmatprep.mubr.f32.mxu0 0.0
      %417 = vmatmul.mubr.f32.gmra.mrb[0].mxu0 %v315
      %v418 = vpop.f32.mrb[0].mxu0
      %v419 = vadd.f32 %v290, %v418
      %v420 = vpop.f32.mrb[0].mxu0
      %421 = vdwg.mxu0
      %s422 = scalar_lea.vmem %s138, 144
      %v423 = vld [vmem:[%s422] sm:$0xff]
      %v424 = vld [vmem:[%s422 + $0x10] sm:$0xff]
      %v425 = vld [vmem:[%s422 + $0x20] sm:$0xff]
      %v426 = vld [vmem:[%s422 + $0x30] sm:$0xff]
      %v427 = vld [vmem:[%s422 + $0x40] sm:$0xff]
      %v428 = vld [vmem:[%s422 + $0x50] sm:$0xff]
      %v429 = vld [vmem:[%s422 + $0x60] sm:$0xff]
      %v430 = vld [vmem:[%s422 + $0x70] sm:$0xff]
      %s431 = scalar_lea.vmem %s1, 16
      %v432 = vld [vmem:[%s431] sm:$0xff]
      %v434 = vsel %vm163, %v423, 0
      %v437 = vsel %vm163, %v424, 0
      %v440 = vsel %vm163, %v425, 0
      %v443 = vsel %vm163, %v426, 0
      %v446 = vsel %vm163, %v427, 0
      %v449 = vsel %vm163, %v428, 0
      %v452 = vsel %vm163, %v429, 0
      %v455 = vsel %vm163, %v430, 0
      %457 = vmatprep.subr.mxu0 0.0
      %458 = vmatpush1.msra.mxu0 %v432
      %459 = vmatprep.subr.mxu0 0.0
      %460 = vmatpush1.msra.mxu0 0.0
      %461 = vmatprep.subr.mxu0 0.0
      %462 = vmatpush1.msra.mxu0 0.0
      %463 = vmatprep.subr.mxu0 0.0
      %464 = vmatpush1.msra.mxu0 0.0
      %465 = vmatprep.subr.mxu0 0.0
      %466 = vmatpush1.msra.mxu0 0.0
      %467 = vmatprep.subr.mxu0 0.0
      %468 = vmatpush1.msra.mxu0 0.0
      %469 = vmatprep.subr.mxu0 0.0
      %470 = vmatpush1.msra.mxu0 0.0
      %471 = vmatprep.subr.mxu0 0.0
      %472 = vmatpush1.msra.mxu0 0.0
      %473 = vmatprep.subr.mxu0 0.0
      %474 = vmatpush1.msra.mxu0 0.0
      %475 = vmatprep.subr.mxu0 0.0
      %476 = vmatpush1.msra.mxu0 0.0
      %477 = vmatprep.subr.mxu0 0.0
      %478 = vmatpush1.msra.mxu0 0.0
      %479 = vmatprep.subr.mxu0 0.0
      %480 = vmatpush1.msra.mxu0 0.0
      %481 = vmatprep.subr.mxu0 0.0
      %482 = vmatpush1.msra.mxu0 0.0
      %483 = vmatprep.subr.mxu0 0.0
      %484 = vmatpush1.msra.mxu0 0.0
      %485 = vmatprep.subr.mxu0 0.0
      %486 = vmatpush1.msra.mxu0 0.0
      %487 = vmatprep.subr.mxu0 0.0
      %488 = vmatpush1.msra.mxu0 0.0
      %489 = vmatprep.subr.mxu0 0.0
      %490 = vmatpush1.msra.mxu0 0.0
      %491 = vmatprep.subr.mxu0 0.0
      %492 = vmatpush1.msra.mxu0 0.0
      %493 = vmatprep.subr.mxu0 0.0
      %494 = vmatpush1.msra.mxu0 0.0
      %495 = vmatprep.subr.mxu0 0.0
      %496 = vmatpush1.msra.mxu0 0.0
      %497 = vmatprep.subr.mxu0 0.0
      %498 = vmatpush1.msra.mxu0 0.0
      %499 = vmatprep.subr.mxu0 0.0
      %500 = vmatpush1.msra.mxu0 0.0
      %501 = vmatprep.subr.mxu0 0.0
      %502 = vmatpush1.msra.mxu0 0.0
      %503 = vmatprep.subr.mxu0 0.0
      %504 = vmatpush1.msra.mxu0 0.0
      %505 = vmatprep.subr.mxu0 0.0
      %506 = vmatpush1.msra.mxu0 0.0
      %507 = vmatprep.subr.mxu0 0.0
      %508 = vmatpush1.msra.mxu0 0.0
      %509 = vmatprep.subr.mxu0 0.0
      %510 = vmatpush1.msra.mxu0 0.0
      %511 = vmatprep.subr.mxu0 0.0
      %512 = vmatpush1.msra.mxu0 0.0
      %513 = vmatprep.subr.mxu0 0.0
      %514 = vmatpush1.msra.mxu0 0.0
      %515 = vmatprep.subr.mxu0 0.0
      %516 = vmatpush1.msra.mxu0 0.0
      %517 = vmatprep.subr.mxu0 0.0
      %518 = vmatpush1.msra.mxu0 0.0
      %519 = vmatprep.subr.mxu0 0.0
      %520 = vmatpush1.msra.mxu0 0.0
      %521 = vmatprep.mubr.f32.mxu0 0.0
      %522 = vmatmul.mubr.f32.gmra.mrb[0].mxu0 %v434
      %v523 = vpop.f32.mrb[0].mxu0
      %v524 = vadd.f32 0.0, %v523
      %v525 = vpop.f32.mrb[0].mxu0
      %526 = vmatprep.mubr.f32.mxu0 0.0
      %527 = vmatmul.mubr.f32.gmra.mrb[0].mxu0 %v437
      %v528 = vpop.f32.mrb[0].mxu0
      %v529 = vadd.f32 0.0, %v528
      %v530 = vpop.f32.mrb[0].mxu0
      %531 = vmatprep.mubr.f32.mxu0 0.0
      %532 = vmatmul.mubr.f32.gmra.mrb[0].mxu0 %v440
      %v533 = vpop.f32.mrb[0].mxu0
      %v534 = vadd.f32 0.0, %v533
      %v535 = vpop.f32.mrb[0].mxu0
      %536 = vmatprep.mubr.f32.mxu0 0.0
      %537 = vmatmul.mubr.f32.gmra.mrb[0].mxu0 %v443
      %v538 = vpop.f32.mrb[0].mxu0
      %v539 = vadd.f32 0.0, %v538
      %v540 = vpop.f32.mrb[0].mxu0
      %541 = vmatprep.mubr.f32.mxu0 0.0
      %542 = vmatmul.mubr.f32.gmra.mrb[0].mxu0 %v446
      %v543 = vpop.f32.mrb[0].mxu0
      %v544 = vadd.f32 0.0, %v543
      %v545 = vpop.f32.mrb[0].mxu0
      %546 = vmatprep.mubr.f32.mxu0 0.0
      %547 = vmatmul.mubr.f32.gmra.mrb[0].mxu0 %v449
      %v548 = vpop.f32.mrb[0].mxu0
      %v549 = vadd.f32 0.0, %v548
      %v550 = vpop.f32.mrb[0].mxu0
      %551 = vmatprep.mubr.f32.mxu0 0.0
      %552 = vmatmul.mubr.f32.gmra.mrb[0].mxu0 %v452
      %v553 = vpop.f32.mrb[0].mxu0
      %v554 = vadd.f32 0.0, %v553
      %v555 = vpop.f32.mrb[0].mxu0
      %556 = vmatprep.mubr.f32.mxu0 0.0
      %557 = vmatmul.mubr.f32.gmra.mrb[0].mxu0 %v455
      %v558 = vpop.f32.mrb[0].mxu0
      %v559 = vadd.f32 0.0, %v558
      %v560 = vpop.f32.mrb[0].mxu0
      %561 = vdwg.mxu0
      %v562 = vadd.f32 %v384, %v524
      %v563 = vadd.f32 %v389, %v529
      %v564 = vadd.f32 %v394, %v534
      %v565 = vadd.f32 %v399, %v539
      %v566 = vadd.f32 %v404, %v544
      %v567 = vadd.f32 %v409, %v549
      %v568 = vadd.f32 %v414, %v554
      %v569 = vadd.f32 %v419, %v559
      %v570 = vld [vmem:[%s422 + $0x1] sm:$0xff]
      %v571 = vld [vmem:[%s422 + $0x11] sm:$0xff]
      %v572 = vld [vmem:[%s422 + $0x21] sm:$0xff]
      %v573 = vld [vmem:[%s422 + $0x31] sm:$0xff]
      %v574 = vld [vmem:[%s422 + $0x41] sm:$0xff]
      %v575 = vld [vmem:[%s422 + $0x51] sm:$0xff]
      %v576 = vld [vmem:[%s422 + $0x61] sm:$0xff]
      %v577 = vld [vmem:[%s422 + $0x71] sm:$0xff]
      %s578 = scalar_lea.vmem %s1, 24
      %v579 = vld [vmem:[%s578] sm:$0xff]
      %v581 = vsel %vm163, %v570, 0
      %v584 = vsel %vm163, %v571, 0
      %v587 = vsel %vm163, %v572, 0
      %v590 = vsel %vm163, %v573, 0
      %v593 = vsel %vm163, %v574, 0
      %v596 = vsel %vm163, %v575, 0
      %v599 = vsel %vm163, %v576, 0
      %v602 = vsel %vm163, %v577, 0
      %604 = vmatprep.subr.mxu0 0.0
      %605 = vmatpush1.msra.mxu0 %v579
      %606 = vmatprep.subr.mxu0 0.0
      %607 = vmatpush1.msra.mxu0 0.0
      %608 = vmatprep.subr.mxu0 0.0
      %609 = vmatpush1.msra.mxu0 0.0
      %610 = vmatprep.subr.mxu0 0.0
      %611 = vmatpush1.msra.mxu0 0.0
      %612 = vmatprep.subr.mxu0 0.0
      %613 = vmatpush1.msra.mxu0 0.0
      %614 = vmatprep.subr.mxu0 0.0
      %615 = vmatpush1.msra.mxu0 0.0
      %616 = vmatprep.subr.mxu0 0.0
      %617 = vmatpush1.msra.mxu0 0.0
      %618 = vmatprep.subr.mxu0 0.0
      %619 = vmatpush1.msra.mxu0 0.0
      %620 = vmatprep.subr.mxu0 0.0
      %621 = vmatpush1.msra.mxu0 0.0
      %622 = vmatprep.subr.mxu0 0.0
      %623 = vmatpush1.msra.mxu0 0.0
      %624 = vmatprep.subr.mxu0 0.0
      %625 = vmatpush1.msra.mxu0 0.0
      %626 = vmatprep.subr.mxu0 0.0
      %627 = vmatpush1.msra.mxu0 0.0
      %628 = vmatprep.subr.mxu0 0.0
      %629 = vmatpush1.msra.mxu0 0.0
      %630 = vmatprep.subr.mxu0 0.0
      %631 = vmatpush1.msra.mxu0 0.0
      %632 = vmatprep.subr.mxu0 0.0
      %633 = vmatpush1.msra.mxu0 0.0
      %634 = vmatprep.subr.mxu0 0.0
      %635 = vmatpush1.msra.mxu0 0.0
      %636 = vmatprep.subr.mxu0 0.0
      %637 = vmatpush1.msra.mxu0 0.0
      %638 = vmatprep.subr.mxu0 0.0
      %639 = vmatpush1.msra.mxu0 0.0
      %640 = vmatprep.subr.mxu0 0.0
      %641 = vmatpush1.msra.mxu0 0.0
      %642 = vmatprep.subr.mxu0 0.0
      %643 = vmatpush1.msra.mxu0 0.0
      %644 = vmatprep.subr.mxu0 0.0
      %645 = vmatpush1.msra.mxu0 0.0
      %646 = vmatprep.subr.mxu0 0.0
      %647 = vmatpush1.msra.mxu0 0.0
      %648 = vmatprep.subr.mxu0 0.0
      %649 = vmatpush1.msra.mxu0 0.0
      %650 = vmatprep.subr.mxu0 0.0
      %651 = vmatpush1.msra.mxu0 0.0
      %652 = vmatprep.subr.mxu0 0.0
      %653 = vmatpush1.msra.mxu0 0.0
      %654 = vmatprep.subr.mxu0 0.0
      %655 = vmatpush1.msra.mxu0 0.0
      %656 = vmatprep.subr.mxu0 0.0
      %657 = vmatpush1.msra.mxu0 0.0
      %658 = vmatprep.subr.mxu0 0.0
      %659 = vmatpush1.msra.mxu0 0.0
      %660 = vmatprep.subr.mxu0 0.0
      %661 = vmatpush1.msra.mxu0 0.0
      %662 = vmatprep.subr.mxu0 0.0
      %663 = vmatpush1.msra.mxu0 0.0
      %664 = vmatprep.subr.mxu0 0.0
      %665 = vmatpush1.msra.mxu0 0.0
      %666 = vmatprep.subr.mxu0 0.0
      %667 = vmatpush1.msra.mxu0 0.0
      %668 = vmatprep.mubr.f32.mxu0 0.0
      %669 = vmatmul.mubr.f32.gmra.mrb[0].mxu0 %v581
      %v670 = vpop.f32.mrb[0].mxu0
      %v671 = vadd.f32 0.0, %v670
      %v672 = vpop.f32.mrb[0].mxu0
      %673 = vmatprep.mubr.f32.mxu0 0.0
      %674 = vmatmul.mubr.f32.gmra.mrb[0].mxu0 %v584
      %v675 = vpop.f32.mrb[0].mxu0
      %v676 = vadd.f32 0.0, %v675
      %v677 = vpop.f32.mrb[0].mxu0
      %678 = vmatprep.mubr.f32.mxu0 0.0
      %679 = vmatmul.mubr.f32.gmra.mrb[0].mxu0 %v587
      %v680 = vpop.f32.mrb[0].mxu0
      %v681 = vadd.f32 0.0, %v680
      %v682 = vpop.f32.mrb[0].mxu0
      %683 = vmatprep.mubr.f32.mxu0 0.0
      %684 = vmatmul.mubr.f32.gmra.mrb[0].mxu0 %v590
      %v685 = vpop.f32.mrb[0].mxu0
      %v686 = vadd.f32 0.0, %v685
      %v687 = vpop.f32.mrb[0].mxu0
      %688 = vmatprep.mubr.f32.mxu0 0.0
      %689 = vmatmul.mubr.f32.gmra.mrb[0].mxu0 %v593
      %v690 = vpop.f32.mrb[0].mxu0
      %v691 = vadd.f32 0.0, %v690
      %v692 = vpop.f32.mrb[0].mxu0
      %693 = vmatprep.mubr.f32.mxu0 0.0
      %694 = vmatmul.mubr.f32.gmra.mrb[0].mxu0 %v596
      %v695 = vpop.f32.mrb[0].mxu0
      %v696 = vadd.f32 0.0, %v695
      %v697 = vpop.f32.mrb[0].mxu0
      %698 = vmatprep.mubr.f32.mxu0 0.0
      %699 = vmatmul.mubr.f32.gmra.mrb[0].mxu0 %v599
      %v700 = vpop.f32.mrb[0].mxu0
      %v701 = vadd.f32 0.0, %v700
      %v702 = vpop.f32.mrb[0].mxu0
      %703 = vmatprep.mubr.f32.mxu0 0.0
      %704 = vmatmul.mubr.f32.gmra.mrb[0].mxu0 %v602
      %v705 = vpop.f32.mrb[0].mxu0
      %v706 = vadd.f32 0.0, %v705
      %v707 = vpop.f32.mrb[0].mxu0
      %708 = vdwg.mxu0
      %v709 = vadd.f32 %v562, %v671
      %v710 = vadd.f32 %v563, %v676
      %v711 = vadd.f32 %v564, %v681
      %v712 = vadd.f32 %v565, %v686
      %v713 = vadd.f32 %v566, %v691
      %v714 = vadd.f32 %v567, %v696
      %v715 = vadd.f32 %v568, %v701
      %v716 = vadd.f32 %v569, %v706
      %s717 = scalar_lea.vmem %s138, 16
      %v718 = vld [vmem:[%s717] sm:$0xff]
      %v719 = vld [vmem:[%s717 + $0x10] sm:$0xff]
      %v720 = vld [vmem:[%s717 + $0x20] sm:$0xff]
      %v721 = vld [vmem:[%s717 + $0x30] sm:$0xff]
      %v722 = vld [vmem:[%s717 + $0x40] sm:$0xff]
      %v723 = vld [vmem:[%s717 + $0x50] sm:$0xff]
      %v724 = vld [vmem:[%s717 + $0x60] sm:$0xff]
      %v725 = vld [vmem:[%s717 + $0x70] sm:$0xff]
      %s726 = scalar_lea.vmem %s1, 32
      %v727 = vld [vmem:[%s726] sm:$0xff]
      %v729 = vsel %vm163, %v718, 0
      %v732 = vsel %vm163, %v719, 0
      %v735 = vsel %vm163, %v720, 0
      %v738 = vsel %vm163, %v721, 0
      %v741 = vsel %vm163, %v722, 0
      %v744 = vsel %vm163, %v723, 0
      %v747 = vsel %vm163, %v724, 0
      %v750 = vsel %vm163, %v725, 0
      %752 = vmatprep.subr.mxu0 0.0
      %753 = vmatpush1.msra.mxu0 %v727
      %754 = vmatprep.subr.mxu0 0.0
      %755 = vmatpush1.msra.mxu0 0.0
      %756 = vmatprep.subr.mxu0 0.0
      %757 = vmatpush1.msra.mxu0 0.0
      %758 = vmatprep.subr.mxu0 0.0
      %759 = vmatpush1.msra.mxu0 0.0
      %760 = vmatprep.subr.mxu0 0.0
      %761 = vmatpush1.msra.mxu0 0.0
      %762 = vmatprep.subr.mxu0 0.0
      %763 = vmatpush1.msra.mxu0 0.0
      %764 = vmatprep.subr.mxu0 0.0
      %765 = vmatpush1.msra.mxu0 0.0
      %766 = vmatprep.subr.mxu0 0.0
      %767 = vmatpush1.msra.mxu0 0.0
      %768 = vmatprep.subr.mxu0 0.0
      %769 = vmatpush1.msra.mxu0 0.0
      %770 = vmatprep.subr.mxu0 0.0
      %771 = vmatpush1.msra.mxu0 0.0
      %772 = vmatprep.subr.mxu0 0.0
      %773 = vmatpush1.msra.mxu0 0.0
      %774 = vmatprep.subr.mxu0 0.0
      %775 = vmatpush1.msra.mxu0 0.0
      %776 = vmatprep.subr.mxu0 0.0
      %777 = vmatpush1.msra.mxu0 0.0
      %778 = vmatprep.subr.mxu0 0.0
      %779 = vmatpush1.msra.mxu0 0.0
      %780 = vmatprep.subr.mxu0 0.0
      %781 = vmatpush1.msra.mxu0 0.0
      %782 = vmatprep.subr.mxu0 0.0
      %783 = vmatpush1.msra.mxu0 0.0
      %784 = vmatprep.subr.mxu0 0.0
      %785 = vmatpush1.msra.mxu0 0.0
      %786 = vmatprep.subr.mxu0 0.0
      %787 = vmatpush1.msra.mxu0 0.0
      %788 = vmatprep.subr.mxu0 0.0
      %789 = vmatpush1.msra.mxu0 0.0
      %790 = vmatprep.subr.mxu0 0.0
      %791 = vmatpush1.msra.mxu0 0.0
      %792 = vmatprep.subr.mxu0 0.0
      %793 = vmatpush1.msra.mxu0 0.0
      %794 = vmatprep.subr.mxu0 0.0
      %795 = vmatpush1.msra.mxu0 0.0
      %796 = vmatprep.subr.mxu0 0.0
      %797 = vmatpush1.msra.mxu0 0.0
      %798 = vmatprep.subr.mxu0 0.0
      %799 = vmatpush1.msra.mxu0 0.0
      %800 = vmatprep.subr.mxu0 0.0
      %801 = vmatpush1.msra.mxu0 0.0
      %802 = vmatprep.subr.mxu0 0.0
      %803 = vmatpush1.msra.mxu0 0.0
      %804 = vmatprep.subr.mxu0 0.0
      %805 = vmatpush1.msra.mxu0 0.0
      %806 = vmatprep.subr.mxu0 0.0
      %807 = vmatpush1.msra.mxu0 0.0
      %808 = vmatprep.subr.mxu0 0.0
      %809 = vmatpush1.msra.mxu0 0.0
      %810 = vmatprep.subr.mxu0 0.0
      %811 = vmatpush1.msra.mxu0 0.0
      %812 = vmatprep.subr.mxu0 0.0
      %813 = vmatpush1.msra.mxu0 0.0
      %814 = vmatprep.subr.mxu0 0.0
      %815 = vmatpush1.msra.mxu0 0.0
      %816 = vmatprep.mubr.f32.mxu0 0.0
      %817 = vmatmul.mubr.f32.gmra.mrb[0].mxu0 %v729
      %v818 = vpop.f32.mrb[0].mxu0
      %v819 = vadd.f32 0.0, %v818
      %v820 = vpop.f32.mrb[0].mxu0
      %821 = vmatprep.mubr.f32.mxu0 0.0
      %822 = vmatmul.mubr.f32.gmra.mrb[0].mxu0 %v732
      %v823 = vpop.f32.mrb[0].mxu0
      %v824 = vadd.f32 0.0, %v823
      %v825 = vpop.f32.mrb[0].mxu0
      %826 = vmatprep.mubr.f32.mxu0 0.0
      %827 = vmatmul.mubr.f32.gmra.mrb[0].mxu0 %v735
      %v828 = vpop.f32.mrb[0].mxu0
      %v829 = vadd.f32 0.0, %v828
      %v830 = vpop.f32.mrb[0].mxu0
      %831 = vmatprep.mubr.f32.mxu0 0.0
      %832 = vmatmul.mubr.f32.gmra.mrb[0].mxu0 %v738
      %v833 = vpop.f32.mrb[0].mxu0
      %v834 = vadd.f32 0.0, %v833
      %v835 = vpop.f32.mrb[0].mxu0
      %836 = vmatprep.mubr.f32.mxu0 0.0
      %837 = vmatmul.mubr.f32.gmra.mrb[0].mxu0 %v741
      %v838 = vpop.f32.mrb[0].mxu0
      %v839 = vadd.f32 0.0, %v838
      %v840 = vpop.f32.mrb[0].mxu0
      %841 = vmatprep.mubr.f32.mxu0 0.0
      %842 = vmatmul.mubr.f32.gmra.mrb[0].mxu0 %v744
      %v843 = vpop.f32.mrb[0].mxu0
      %v844 = vadd.f32 0.0, %v843
      %v845 = vpop.f32.mrb[0].mxu0
      %846 = vmatprep.mubr.f32.mxu0 0.0
      %847 = vmatmul.mubr.f32.gmra.mrb[0].mxu0 %v747
      %v848 = vpop.f32.mrb[0].mxu0
      %v849 = vadd.f32 0.0, %v848
      %v850 = vpop.f32.mrb[0].mxu0
      %851 = vmatprep.mubr.f32.mxu0 0.0
      %852 = vmatmul.mubr.f32.gmra.mrb[0].mxu0 %v750
      %v853 = vpop.f32.mrb[0].mxu0
      %v854 = vadd.f32 0.0, %v853
      %v855 = vpop.f32.mrb[0].mxu0
      %856 = vdwg.mxu0
      %v857 = vadd.f32 %v709, %v819
      %v858 = vadd.f32 %v710, %v824
      %v859 = vadd.f32 %v711, %v829
      %v860 = vadd.f32 %v712, %v834
      %v861 = vadd.f32 %v713, %v839
      %v862 = vadd.f32 %v714, %v844
      %v863 = vadd.f32 %v715, %v849
      %v864 = vadd.f32 %v716, %v854
      %v865 = vld [vmem:[%s717 + $0x1] sm:$0xff]
      %v866 = vld [vmem:[%s717 + $0x11] sm:$0xff]
      %v867 = vld [vmem:[%s717 + $0x21] sm:$0xff]
      %v868 = vld [vmem:[%s717 + $0x31] sm:$0xff]
      %v869 = vld [vmem:[%s717 + $0x41] sm:$0xff]
      %v870 = vld [vmem:[%s717 + $0x51] sm:$0xff]
      %v871 = vld [vmem:[%s717 + $0x61] sm:$0xff]
      %v872 = vld [vmem:[%s717 + $0x71] sm:$0xff]
      %s873 = scalar_lea.vmem %s1, 40
      %v874 = vld [vmem:[%s873] sm:$0xff]
      %v876 = vsel %vm163, %v865, 0
      %v879 = vsel %vm163, %v866, 0
      %v882 = vsel %vm163, %v867, 0
      %v885 = vsel %vm163, %v868, 0
      %v888 = vsel %vm163, %v869, 0
      %v891 = vsel %vm163, %v870, 0
      %v894 = vsel %vm163, %v871, 0
      %v897 = vsel %vm163, %v872, 0
      %899 = vmatprep.subr.mxu0 0.0
      %900 = vmatpush1.msra.mxu0 %v874
      %901 = vmatprep.subr.mxu0 0.0
      %902 = vmatpush1.msra.mxu0 0.0
      %903 = vmatprep.subr.mxu0 0.0
      %904 = vmatpush1.msra.mxu0 0.0
      %905 = vmatprep.subr.mxu0 0.0
      %906 = vmatpush1.msra.mxu0 0.0
      %907 = vmatprep.subr.mxu0 0.0
      %908 = vmatpush1.msra.mxu0 0.0
      %909 = vmatprep.subr.mxu0 0.0
      %910 = vmatpush1.msra.mxu0 0.0
      %911 = vmatprep.subr.mxu0 0.0
      %912 = vmatpush1.msra.mxu0 0.0
      %913 = vmatprep.subr.mxu0 0.0
      %914 = vmatpush1.msra.mxu0 0.0
      %915 = vmatprep.subr.mxu0 0.0
      %916 = vmatpush1.msra.mxu0 0.0
      %917 = vmatprep.subr.mxu0 0.0
      %918 = vmatpush1.msra.mxu0 0.0
      %919 = vmatprep.subr.mxu0 0.0
      %920 = vmatpush1.msra.mxu0 0.0
      %921 = vmatprep.subr.mxu0 0.0
      %922 = vmatpush1.msra.mxu0 0.0
      %923 = vmatprep.subr.mxu0 0.0
      %924 = vmatpush1.msra.mxu0 0.0
      %925 = vmatprep.subr.mxu0 0.0
      %926 = vmatpush1.msra.mxu0 0.0
      %927 = vmatprep.subr.mxu0 0.0
      %928 = vmatpush1.msra.mxu0 0.0
      %929 = vmatprep.subr.mxu0 0.0
      %930 = vmatpush1.msra.mxu0 0.0
      %931 = vmatprep.subr.mxu0 0.0
      %932 = vmatpush1.msra.mxu0 0.0
      %933 = vmatprep.subr.mxu0 0.0
      %934 = vmatpush1.msra.mxu0 0.0
      %935 = vmatprep.subr.mxu0 0.0
      %936 = vmatpush1.msra.mxu0 0.0
      %937 = vmatprep.subr.mxu0 0.0
      %938 = vmatpush1.msra.mxu0 0.0
      %939 = vmatprep.subr.mxu0 0.0
      %940 = vmatpush1.msra.mxu0 0.0
      %941 = vmatprep.subr.mxu0 0.0
      %942 = vmatpush1.msra.mxu0 0.0
      %943 = vmatprep.subr.mxu0 0.0
      %944 = vmatpush1.msra.mxu0 0.0
      %945 = vmatprep.subr.mxu0 0.0
      %946 = vmatpush1.msra.mxu0 0.0
      %947 = vmatprep.subr.mxu0 0.0
      %948 = vmatpush1.msra.mxu0 0.0
      %949 = vmatprep.subr.mxu0 0.0
      %950 = vmatpush1.msra.mxu0 0.0
      %951 = vmatprep.subr.mxu0 0.0
      %952 = vmatpush1.msra.mxu0 0.0
      %953 = vmatprep.subr.mxu0 0.0
      %954 = vmatpush1.msra.mxu0 0.0
      %955 = vmatprep.subr.mxu0 0.0
      %956 = vmatpush1.msra.mxu0 0.0
      %957 = vmatprep.subr.mxu0 0.0
      %958 = vmatpush1.msra.mxu0 0.0
      %959 = vmatprep.subr.mxu0 0.0
      %960 = vmatpush1.msra.mxu0 0.0
      %961 = vmatprep.subr.mxu0 0.0
      %962 = vmatpush1.msra.mxu0 0.0
      %963 = vmatprep.mubr.f32.mxu0 0.0
      %964 = vmatmul.mubr.f32.gmra.mrb[0].mxu0 %v876
      %v965 = vpop.f32.mrb[0].mxu0
      %v966 = vadd.f32 0.0, %v965
      %v967 = vpop.f32.mrb[0].mxu0
      %968 = vmatprep.mubr.f32.mxu0 0.0
      %969 = vmatmul.mubr.f32.gmra.mrb[0].mxu0 %v879
      %v970 = vpop.f32.mrb[0].mxu0
      %v971 = vadd.f32 0.0, %v970
      %v972 = vpop.f32.mrb[0].mxu0
      %973 = vmatprep.mubr.f32.mxu0 0.0
      %974 = vmatmul.mubr.f32.gmra.mrb[0].mxu0 %v882
      %v975 = vpop.f32.mrb[0].mxu0
      %v976 = vadd.f32 0.0, %v975
      %v977 = vpop.f32.mrb[0].mxu0
      %978 = vmatprep.mubr.f32.mxu0 0.0
      %979 = vmatmul.mubr.f32.gmra.mrb[0].mxu0 %v885
      %v980 = vpop.f32.mrb[0].mxu0
      %v981 = vadd.f32 0.0, %v980
      %v982 = vpop.f32.mrb[0].mxu0
      %983 = vmatprep.mubr.f32.mxu0 0.0
      %984 = vmatmul.mubr.f32.gmra.mrb[0].mxu0 %v888
      %v985 = vpop.f32.mrb[0].mxu0
      %v986 = vadd.f32 0.0, %v985
      %v987 = vpop.f32.mrb[0].mxu0
      %988 = vmatprep.mubr.f32.mxu0 0.0
      %989 = vmatmul.mubr.f32.gmra.mrb[0].mxu0 %v891
      %v990 = vpop.f32.mrb[0].mxu0
      %v991 = vadd.f32 0.0, %v990
      %v992 = vpop.f32.mrb[0].mxu0
      %993 = vmatprep.mubr.f32.mxu0 0.0
      %994 = vmatmul.mubr.f32.gmra.mrb[0].mxu0 %v894
      %v995 = vpop.f32.mrb[0].mxu0
      %v996 = vadd.f32 0.0, %v995
      %v997 = vpop.f32.mrb[0].mxu0
      %998 = vmatprep.mubr.f32.mxu0 0.0
      %999 = vmatmul.mubr.f32.gmra.mrb[0].mxu0 %v897
      %v1000 = vpop.f32.mrb[0].mxu0
      %v1001 = vadd.f32 0.0, %v1000
      %v1002 = vpop.f32.mrb[0].mxu0
      %1003 = vdwg.mxu0
      %v1004 = vadd.f32 %v857, %v966
      %v1005 = vadd.f32 %v858, %v971
      %v1006 = vadd.f32 %v859, %v976
      %v1007 = vadd.f32 %v860, %v981
      %v1008 = vadd.f32 %v861, %v986
      %v1009 = vadd.f32 %v862, %v991
      %v1010 = vadd.f32 %v863, %v996
      %v1011 = vadd.f32 %v864, %v1001
      %s1012 = scalar_lea.vmem %s138, 160
      %v1013 = vld [vmem:[%s1012] sm:$0xff]
      %v1014 = vld [vmem:[%s1012 + $0x10] sm:$0xff]
      %v1015 = vld [vmem:[%s1012 + $0x20] sm:$0xff]
      %v1016 = vld [vmem:[%s1012 + $0x30] sm:$0xff]
      %v1017 = vld [vmem:[%s1012 + $0x40] sm:$0xff]
      %v1018 = vld [vmem:[%s1012 + $0x50] sm:$0xff]
      %v1019 = vld [vmem:[%s1012 + $0x60] sm:$0xff]
      %v1020 = vld [vmem:[%s1012 + $0x70] sm:$0xff]
      %s1021 = scalar_lea.vmem %s1, 48
      %v1022 = vld [vmem:[%s1021] sm:$0xff]
      %v1024 = vsel %vm163, %v1013, 0
      %v1027 = vsel %vm163, %v1014, 0
      %v1030 = vsel %vm163, %v1015, 0
      %v1033 = vsel %vm163, %v1016, 0
      %v1036 = vsel %vm163, %v1017, 0
      %v1039 = vsel %vm163, %v1018, 0
      %v1042 = vsel %vm163, %v1019, 0
      %v1045 = vsel %vm163, %v1020, 0
      %1047 = vmatprep.subr.mxu0 0.0
      %1048 = vmatpush1.msra.mxu0 %v1022
      %1049 = vmatprep.subr.mxu0 0.0
      %1050 = vmatpush1.msra.mxu0 0.0
      %1051 = vmatprep.subr.mxu0 0.0
      %1052 = vmatpush1.msra.mxu0 0.0
      %1053 = vmatprep.subr.mxu0 0.0
      %1054 = vmatpush1.msra.mxu0 0.0
      %1055 = vmatprep.subr.mxu0 0.0
      %1056 = vmatpush1.msra.mxu0 0.0
      %1057 = vmatprep.subr.mxu0 0.0
      %1058 = vmatpush1.msra.mxu0 0.0
      %1059 = vmatprep.subr.mxu0 0.0
      %1060 = vmatpush1.msra.mxu0 0.0
      %1061 = vmatprep.subr.mxu0 0.0
      %1062 = vmatpush1.msra.mxu0 0.0
      %1063 = vmatprep.subr.mxu0 0.0
      %1064 = vmatpush1.msra.mxu0 0.0
      %1065 = vmatprep.subr.mxu0 0.0
      %1066 = vmatpush1.msra.mxu0 0.0
      %1067 = vmatprep.subr.mxu0 0.0
      %1068 = vmatpush1.msra.mxu0 0.0
      %1069 = vmatprep.subr.mxu0 0.0
      %1070 = vmatpush1.msra.mxu0 0.0
      %1071 = vmatprep.subr.mxu0 0.0
      %1072 = vmatpush1.msra.mxu0 0.0
      %1073 = vmatprep.subr.mxu0 0.0
      %1074 = vmatpush1.msra.mxu0 0.0
      %1075 = vmatprep.subr.mxu0 0.0
      %1076 = vmatpush1.msra.mxu0 0.0
      %1077 = vmatprep.subr.mxu0 0.0
      %1078 = vmatpush1.msra.mxu0 0.0
      %1079 = vmatprep.subr.mxu0 0.0
      %1080 = vmatpush1.msra.mxu0 0.0
      %1081 = vmatprep.subr.mxu0 0.0
      %1082 = vmatpush1.msra.mxu0 0.0
      %1083 = vmatprep.subr.mxu0 0.0
      %1084 = vmatpush1.msra.mxu0 0.0
      %1085 = vmatprep.subr.mxu0 0.0
      %1086 = vmatpush1.msra.mxu0 0.0
      %1087 = vmatprep.subr.mxu0 0.0
      %1088 = vmatpush1.msra.mxu0 0.0
      %1089 = vmatprep.subr.mxu0 0.0
      %1090 = vmatpush1.msra.mxu0 0.0
      %1091 = vmatprep.subr.mxu0 0.0
      %1092 = vmatpush1.msra.mxu0 0.0
      %1093 = vmatprep.subr.mxu0 0.0
      %1094 = vmatpush1.msra.mxu0 0.0
      %1095 = vmatprep.subr.mxu0 0.0
      %1096 = vmatpush1.msra.mxu0 0.0
      %1097 = vmatprep.subr.mxu0 0.0
      %1098 = vmatpush1.msra.mxu0 0.0
      %1099 = vmatprep.subr.mxu0 0.0
      %1100 = vmatpush1.msra.mxu0 0.0
      %1101 = vmatprep.subr.mxu0 0.0
      %1102 = vmatpush1.msra.mxu0 0.0
      %1103 = vmatprep.subr.mxu0 0.0
      %1104 = vmatpush1.msra.mxu0 0.0
      %1105 = vmatprep.subr.mxu0 0.0
      %1106 = vmatpush1.msra.mxu0 0.0
      %1107 = vmatprep.subr.mxu0 0.0
      %1108 = vmatpush1.msra.mxu0 0.0
      %1109 = vmatprep.subr.mxu0 0.0
      %1110 = vmatpush1.msra.mxu0 0.0
      %1111 = vmatprep.mubr.f32.mxu0 0.0
      %1112 = vmatmul.mubr.f32.gmra.mrb[0].mxu0 %v1024
      %v1113 = vpop.f32.mrb[0].mxu0
      %v1114 = vadd.f32 0.0, %v1113
      %v1115 = vpop.f32.mrb[0].mxu0
      %1116 = vmatprep.mubr.f32.mxu0 0.0
      %1117 = vmatmul.mubr.f32.gmra.mrb[0].mxu0 %v1027
      %v1118 = vpop.f32.mrb[0].mxu0
      %v1119 = vadd.f32 0.0, %v1118
      %v1120 = vpop.f32.mrb[0].mxu0
      %1121 = vmatprep.mubr.f32.mxu0 0.0
      %1122 = vmatmul.mubr.f32.gmra.mrb[0].mxu0 %v1030
      %v1123 = vpop.f32.mrb[0].mxu0
      %v1124 = vadd.f32 0.0, %v1123
      %v1125 = vpop.f32.mrb[0].mxu0
      %1126 = vmatprep.mubr.f32.mxu0 0.0
      %1127 = vmatmul.mubr.f32.gmra.mrb[0].mxu0 %v1033
      %v1128 = vpop.f32.mrb[0].mxu0
      %v1129 = vadd.f32 0.0, %v1128
      %v1130 = vpop.f32.mrb[0].mxu0
      %1131 = vmatprep.mubr.f32.mxu0 0.0
      %1132 = vmatmul.mubr.f32.gmra.mrb[0].mxu0 %v1036
      %v1133 = vpop.f32.mrb[0].mxu0
      %v1134 = vadd.f32 0.0, %v1133
      %v1135 = vpop.f32.mrb[0].mxu0
      %1136 = vmatprep.mubr.f32.mxu0 0.0
      %1137 = vmatmul.mubr.f32.gmra.mrb[0].mxu0 %v1039
      %v1138 = vpop.f32.mrb[0].mxu0
      %v1139 = vadd.f32 0.0, %v1138
      %v1140 = vpop.f32.mrb[0].mxu0
      %1141 = vmatprep.mubr.f32.mxu0 0.0
      %1142 = vmatmul.mubr.f32.gmra.mrb[0].mxu0 %v1042
      %v1143 = vpop.f32.mrb[0].mxu0
      %v1144 = vadd.f32 0.0, %v1143
      %v1145 = vpop.f32.mrb[0].mxu0
      %1146 = vmatprep.mubr.f32.mxu0 0.0
      %1147 = vmatmul.mubr.f32.gmra.mrb[0].mxu0 %v1045
      %v1148 = vpop.f32.mrb[0].mxu0
      %v1149 = vadd.f32 0.0, %v1148
      %v1150 = vpop.f32.mrb[0].mxu0
      %1151 = vdwg.mxu0
      %v1152 = vadd.f32 %v1004, %v1114
      %v1153 = vadd.f32 %v1005, %v1119
      %v1154 = vadd.f32 %v1006, %v1124
      %v1155 = vadd.f32 %v1007, %v1129
      %v1156 = vadd.f32 %v1008, %v1134
      %v1157 = vadd.f32 %v1009, %v1139
      %v1158 = vadd.f32 %v1010, %v1144
      %v1159 = vadd.f32 %v1011, %v1149
      %v1160 = vld [vmem:[%s1012 + $0x1] sm:$0xff]
      %v1161 = vld [vmem:[%s1012 + $0x11] sm:$0xff]
      %v1162 = vld [vmem:[%s1012 + $0x21] sm:$0xff]
      %v1163 = vld [vmem:[%s1012 + $0x31] sm:$0xff]
      %v1164 = vld [vmem:[%s1012 + $0x41] sm:$0xff]
      %v1165 = vld [vmem:[%s1012 + $0x51] sm:$0xff]
      %v1166 = vld [vmem:[%s1012 + $0x61] sm:$0xff]
      %v1167 = vld [vmem:[%s1012 + $0x71] sm:$0xff]
      %s1168 = scalar_lea.vmem %s1, 56
      %v1169 = vld [vmem:[%s1168] sm:$0xff]
      %v1171 = vsel %vm163, %v1160, 0
      %v1174 = vsel %vm163, %v1161, 0
      %v1177 = vsel %vm163, %v1162, 0
      %v1180 = vsel %vm163, %v1163, 0
      %v1183 = vsel %vm163, %v1164, 0
      %v1186 = vsel %vm163, %v1165, 0
      %v1189 = vsel %vm163, %v1166, 0
      %v1192 = vsel %vm163, %v1167, 0
      %1194 = vmatprep.subr.mxu0 0.0
      %1195 = vmatpush1.msra.mxu0 %v1169
      %1196 = vmatprep.subr.mxu0 0.0
      %1197 = vmatpush1.msra.mxu0 0.0
      %1198 = vmatprep.subr.mxu0 0.0
      %1199 = vmatpush1.msra.mxu0 0.0
      %1200 = vmatprep.subr.mxu0 0.0
      %1201 = vmatpush1.msra.mxu0 0.0
      %1202 = vmatprep.subr.mxu0 0.0
      %1203 = vmatpush1.msra.mxu0 0.0
      %1204 = vmatprep.subr.mxu0 0.0
      %1205 = vmatpush1.msra.mxu0 0.0
      %1206 = vmatprep.subr.mxu0 0.0
      %1207 = vmatpush1.msra.mxu0 0.0
      %1208 = vmatprep.subr.mxu0 0.0
      %1209 = vmatpush1.msra.mxu0 0.0
      %1210 = vmatprep.subr.mxu0 0.0
      %1211 = vmatpush1.msra.mxu0 0.0
      %1212 = vmatprep.subr.mxu0 0.0
      %1213 = vmatpush1.msra.mxu0 0.0
      %1214 = vmatprep.subr.mxu0 0.0
      %1215 = vmatpush1.msra.mxu0 0.0
      %1216 = vmatprep.subr.mxu0 0.0
      %1217 = vmatpush1.msra.mxu0 0.0
      %1218 = vmatprep.subr.mxu0 0.0
      %1219 = vmatpush1.msra.mxu0 0.0
      %1220 = vmatprep.subr.mxu0 0.0
      %1221 = vmatpush1.msra.mxu0 0.0
      %1222 = vmatprep.subr.mxu0 0.0
      %1223 = vmatpush1.msra.mxu0 0.0
      %1224 = vmatprep.subr.mxu0 0.0
      %1225 = vmatpush1.msra.mxu0 0.0
      %1226 = vmatprep.subr.mxu0 0.0
      %1227 = vmatpush1.msra.mxu0 0.0
      %1228 = vmatprep.subr.mxu0 0.0
      %1229 = vmatpush1.msra.mxu0 0.0
      %1230 = vmatprep.subr.mxu0 0.0
      %1231 = vmatpush1.msra.mxu0 0.0
      %1232 = vmatprep.subr.mxu0 0.0
      %1233 = vmatpush1.msra.mxu0 0.0
      %1234 = vmatprep.subr.mxu0 0.0
      %1235 = vmatpush1.msra.mxu0 0.0
      %1236 = vmatprep.subr.mxu0 0.0
      %1237 = vmatpush1.msra.mxu0 0.0
      %1238 = vmatprep.subr.mxu0 0.0
      %1239 = vmatpush1.msra.mxu0 0.0
      %1240 = vmatprep.subr.mxu0 0.0
      %1241 = vmatpush1.msra.mxu0 0.0
      %1242 = vmatprep.subr.mxu0 0.0
      %1243 = vmatpush1.msra.mxu0 0.0
      %1244 = vmatprep.subr.mxu0 0.0
      %1245 = vmatpush1.msra.mxu0 0.0
      %1246 = vmatprep.subr.mxu0 0.0
      %1247 = vmatpush1.msra.mxu0 0.0
      %1248 = vmatprep.subr.mxu0 0.0
      %1249 = vmatpush1.msra.mxu0 0.0
      %1250 = vmatprep.subr.mxu0 0.0
      %1251 = vmatpush1.msra.mxu0 0.0
      %1252 = vmatprep.subr.mxu0 0.0
      %1253 = vmatpush1.msra.mxu0 0.0
      %1254 = vmatprep.subr.mxu0 0.0
      %1255 = vmatpush1.msra.mxu0 0.0
      %1256 = vmatprep.subr.mxu0 0.0
      %1257 = vmatpush1.msra.mxu0 0.0
      %1258 = vmatprep.mubr.f32.mxu0 0.0
      %1259 = vmatmul.mubr.f32.gmra.mrb[0].mxu0 %v1171
      %v1260 = vpop.f32.mrb[0].mxu0
      %v1261 = vadd.f32 0.0, %v1260
      %v1262 = vpop.f32.mrb[0].mxu0
      %1263 = vmatprep.mubr.f32.mxu0 0.0
      %1264 = vmatmul.mubr.f32.gmra.mrb[0].mxu0 %v1174
      %v1265 = vpop.f32.mrb[0].mxu0
      %v1266 = vadd.f32 0.0, %v1265
      %v1267 = vpop.f32.mrb[0].mxu0
      %1268 = vmatprep.mubr.f32.mxu0 0.0
      %1269 = vmatmul.mubr.f32.gmra.mrb[0].mxu0 %v1177
      %v1270 = vpop.f32.mrb[0].mxu0
      %v1271 = vadd.f32 0.0, %v1270
      %v1272 = vpop.f32.mrb[0].mxu0
      %1273 = vmatprep.mubr.f32.mxu0 0.0
      %1274 = vmatmul.mubr.f32.gmra.mrb[0].mxu0 %v1180
      %v1275 = vpop.f32.mrb[0].mxu0
      %v1276 = vadd.f32 0.0, %v1275
      %v1277 = vpop.f32.mrb[0].mxu0
      %1278 = vmatprep.mubr.f32.mxu0 0.0
      %1279 = vmatmul.mubr.f32.gmra.mrb[0].mxu0 %v1183
      %v1280 = vpop.f32.mrb[0].mxu0
      %v1281 = vadd.f32 0.0, %v1280
      %v1282 = vpop.f32.mrb[0].mxu0
      %1283 = vmatprep.mubr.f32.mxu0 0.0
      %1284 = vmatmul.mubr.f32.gmra.mrb[0].mxu0 %v1186
      %v1285 = vpop.f32.mrb[0].mxu0
      %v1286 = vadd.f32 0.0, %v1285
      %v1287 = vpop.f32.mrb[0].mxu0
      %1288 = vmatprep.mubr.f32.mxu0 0.0
      %1289 = vmatmul.mubr.f32.gmra.mrb[0].mxu0 %v1189
      %v1290 = vpop.f32.mrb[0].mxu0
      %v1291 = vadd.f32 0.0, %v1290
      %v1292 = vpop.f32.mrb[0].mxu0
      %1293 = vmatprep.mubr.f32.mxu0 0.0
      %1294 = vmatmul.mubr.f32.gmra.mrb[0].mxu0 %v1192
      %v1295 = vpop.f32.mrb[0].mxu0
      %v1296 = vadd.f32 0.0, %v1295
      %v1297 = vpop.f32.mrb[0].mxu0
      %1298 = vdwg.mxu0
      %v1299 = vadd.f32 %v1152, %v1261
      %v1300 = vadd.f32 %v1153, %v1266
      %v1301 = vadd.f32 %v1154, %v1271
      %v1302 = vadd.f32 %v1155, %v1276
      %v1303 = vadd.f32 %v1156, %v1281
      %v1304 = vadd.f32 %v1157, %v1286
      %v1305 = vadd.f32 %v1158, %v1291
      %v1306 = vadd.f32 %v1159, %v1296
      %v1307 = vadd.f32 %v1299, %v1300
      %v1308 = vadd.f32 %v1307, %v1301
      %v1309 = vadd.f32 %v1308, %v1302
      %v1310 = vadd.f32 %v1309, %v1303
      %v1311 = vadd.f32 %v1310, %v1304
      %v1312 = vadd.f32 %v1311, %v1305
      %v1313 = vadd.f32 %v1312, %v1306
      %v1314 = vrot.slane %v1313, 4
      %v1315 = vadd.f32 %v1313, %v1314
      %v1316 = vrot.slane %v1315, 2
      %v1317 = vadd.f32 %v1315, %v1316
      %v1318 = vrot.slane %v1317, 1
      %v1319 = vadd.f32 %v1317, %v1318
      %v1320 = vmul.f32 %v1319, 0.015625
      %v1321 = vmul.f32 %v1299, %v1299
      %v1322 = vmul.f32 %v1300, %v1300
      %v1323 = vmul.f32 %v1301, %v1301
      %v1324 = vmul.f32 %v1302, %v1302
      %v1325 = vmul.f32 %v1303, %v1303
      %v1326 = vmul.f32 %v1304, %v1304
      %v1327 = vmul.f32 %v1305, %v1305
      %v1328 = vmul.f32 %v1306, %v1306
      %v1329 = vadd.f32 %v1321, %v1322
      %v1330 = vadd.f32 %v1329, %v1323
      %v1331 = vadd.f32 %v1330, %v1324
      %v1332 = vadd.f32 %v1331, %v1325
      %v1333 = vadd.f32 %v1332, %v1326
      %v1334 = vadd.f32 %v1333, %v1327
      %v1335 = vadd.f32 %v1334, %v1328
      %v1336 = vrot.slane %v1335, 4
      %v1337 = vadd.f32 %v1335, %v1336
      %v1338 = vrot.slane %v1337, 2
      %v1339 = vadd.f32 %v1337, %v1338
      %v1340 = vrot.slane %v1339, 1
      %v1341 = vadd.f32 %v1339, %v1340
      %v1342 = vmul.f32 %v1341, 0.015625
      %v1343 = vmul.f32 %v1320, %v1320
      %v1344 = vsub.f32 %v1342, %v1343
      %v1345 = vmax.f32 %v1344, 0.0
      %v1346 = vadd.f32 %v1345, 1e-05
      %v1347 = vrsqrt.pop %v1346
      %v1348 = vsub.f32 %v1299, %v1320
      %v1349 = vsub.f32 %v1300, %v1320
      %v1350 = vsub.f32 %v1301, %v1320
      %v1351 = vsub.f32 %v1302, %v1320
      %v1352 = vsub.f32 %v1303, %v1320
      %v1353 = vsub.f32 %v1304, %v1320
      %v1354 = vsub.f32 %v1305, %v1320
      %v1355 = vsub.f32 %v1306, %v1320
      %v1356 = vmul.f32 %v1348, %v1347
      %v1357 = vmul.f32 %v1349, %v1347
      %v1358 = vmul.f32 %v1350, %v1347
      %v1359 = vmul.f32 %v1351, %v1347
      %v1360 = vmul.f32 %v1352, %v1347
      %v1361 = vmul.f32 %v1353, %v1347
      %v1362 = vmul.f32 %v1354, %v1347
      %v1363 = vmul.f32 %v1355, %v1347
      %vm1364 = vcmp.ge.f32.partialorder %v1356, 0.0
      %vm1365 = vcmp.ge.f32.partialorder %v1357, 0.0
      %vm1366 = vcmp.ge.f32.partialorder %v1358, 0.0
      %vm1367 = vcmp.ge.f32.partialorder %v1359, 0.0
      %vm1368 = vcmp.ge.f32.partialorder %v1360, 0.0
      %vm1369 = vcmp.ge.f32.partialorder %v1361, 0.0
      %vm1370 = vcmp.ge.f32.partialorder %v1362, 0.0
      %vm1371 = vcmp.ge.f32.partialorder %v1363, 0.0
      %v1372 = vmul.f32 %v1356, 0.2
      %v1373 = vmul.f32 %v1357, 0.2
      %v1374 = vmul.f32 %v1358, 0.2
      %v1375 = vmul.f32 %v1359, 0.2
      %v1376 = vmul.f32 %v1360, 0.2
      %v1377 = vmul.f32 %v1361, 0.2
      %v1378 = vmul.f32 %v1362, 0.2
      %v1379 = vmul.f32 %v1363, 0.2
      %v1380 = vsel %vm1364, %v1356, %v1372
      %v1381 = vsel %vm1365, %v1357, %v1373
      %v1382 = vsel %vm1366, %v1358, %v1374
      %v1383 = vsel %vm1367, %v1359, %v1375
      %v1384 = vsel %vm1368, %v1360, %v1376
      %v1385 = vsel %vm1369, %v1361, %v1377
      %v1386 = vsel %vm1370, %v1362, %v1378
      %v1387 = vsel %vm1371, %v1363, %v1379
      %1388 = vst [vmem:[%s143] sm:$0xff] %v1380
      %1389 = vst [vmem:[%s143 + $0x8] sm:$0xff] %v1381
      %1390 = vst [vmem:[%s143 + $0x10] sm:$0xff] %v1382
      %1391 = vst [vmem:[%s143 + $0x18] sm:$0xff] %v1383
      %1392 = vst [vmem:[%s143 + $0x20] sm:$0xff] %v1384
      %1393 = vst [vmem:[%s143 + $0x28] sm:$0xff] %v1385
      %1394 = vst [vmem:[%s143 + $0x30] sm:$0xff] %v1386
      %1395 = vst [vmem:[%s143 + $0x38] sm:$0xff] %v1387
      %p1396 = scmp.lt.s32.totalorder %s13, 1
      %s1397 = scalar_select %p1396, %s13, 1
      %s1398 = smul.addr %s1397, 8
      %s1399 = smul.addr %s1398, 8
      %s1400 = scalar_lea.vmem %s2, %s1399
      // Predicated region
      $region29: #{down_conv_block.1} parent=27 // pred_check
        %p1401 = pneg %p78
      $region30: #{down_conv_block.1} parent=27 // pred_check_branch
        %1403 = sbr.rel (%p1401) target = $region32
      $region31: #{down_conv_block.1} parent=27 // pred_region
        _
      $region32: #{down_conv_block.1} parent=27 // pred_fallthru
        _
    $region28: #{down_conv_block.1} parent=5 // pred_fallthru
      _
    %p1404 = scmp.le.s32.totalorder 2, %s8
    // Predicated region
    $region33: #{down_conv_block.1} parent=5 // pred_check
      %p1405 = pneg %p1404
    $region34: #{down_conv_block.1} parent=5 // pred_check_branch
      %1407 = sbr.rel (%p1405) target = $region36
    $region35: #{down_conv_block.1} parent=5 // pred_region
      %s1408 = ssub.s32 %s8, 2
      // Predicated region
      $region37: #{down_conv_block.1} parent=35 // pred_check
        %p1409 = pneg %p84
      $region38: #{down_conv_block.1} parent=35 // pred_check_branch
        %1411 = sbr.rel (%p1409) target = $region40
      $region39: #{down_conv_block.1} parent=35 // pred_region
        %p1412 = scmp.lt.s32.totalorder %s14, 1
        %s1413 = scalar_select %p1412, %s14, 1
        %s1414 = smul.addr %s1413, 8
        %s1415 = smul.addr %s1414, 8
        %s1416 = scalar_lea.vmem %s2, %s1415
      $region40: #{down_conv_block.1} parent=35 // pred_fallthru
        _
    $region36: #{down_conv_block.1} parent=5 // pred_fallthru
      _
  $region6: #{down_conv_block.1} parent=0 // loop_footer
    %s12 = sadd.s32 1, %s8
  $region7: #{down_conv_block.1} parent=0 // loop_footer_branch
    %7 = sbr.rel target = $region3
  $region8: #{down_conv_block.1} parent=0 // loop_exit
    _

</llo_original>
